<compile_context>
chip_gen: v6e
topology: v6e:2x2x1
jax: 0.10.0
libtpu: 0.0.40
codegen_flags: <defaults>
</compile_context>

<pallas_src>
import numpy as np
import jax
import jax.numpy as jnp
from jax import lax
from jax.experimental import pallas as pl
from jax.experimental.pallas import tpu as pltpu


def cnn_feature_extraction(inp, weight, bias):
    """Forward pass of CNNFeatureExtraction.

    inp:    (B, H, W, C)    -- the module raw-reshapes (NOT permutes) this to (B, C, H, W)
    weight: (OC, C, KH, KW) -- PyTorch Conv2d weight layout
    bias:   (OC,)
    returns (B, OC * (H-KH+1) * (W-KW+1))
    """
    B, H, W, C = inp.shape
    OC, C_w, KH, KW = weight.shape
    assert C_w == C
    # The roll-based im2col + selection-matrix compaction is only valid for stride=1,
    # VALID padding, no dilation, and a kernel that fits inside the image.
    assert KH <= H and KW <= W
    OH, OW = H - KH + 1, W - KW + 1
    HW, M = H * W, OH * OW
    J = KH * KW                      # number of conv taps (12)
    BC = B * C

    # torch.reshape quirk (raw reinterpretation to NCHW) + per-channel-plane flatten:
    # both are contiguous row-major reshapes -> free, no data movement, no extra HLO.
    x_flat = jnp.reshape(inp, (BC, HW)).astype(jnp.float32)

    # Block-diagonal fused conv weight, (B*OC, KH*KW*B*C) = (16, 96):
    #   w_big[b*OC+oc, j*B*C + b*C + c] = weight[oc, c, kh, kw],  j = kh*KW + kw
    # so the whole conv becomes one GEMM against the in-kernel im2col stack.  B is tiny,
    # so the B-fold zero padding of the weight is negligible (16x96 f32).
    w_taps = jnp.transpose(weight, (2, 3, 0, 1)).reshape(J, OC, C).astype(jnp.float32)
    w_big = jnp.einsum("joc,bd->bojdc", w_taps, jnp.eye(B, dtype=jnp.float32))
    w_big = w_big.reshape(B * OC, J * BC)

    # Bias replicated per batch -> (B*OC, 1).
    b_big = jnp.tile(bias.astype(jnp.float32), B).reshape(B * OC, 1)

    # Constant 0/1 selection matrix: output column m = oh*OW + ow picks accumulator column
    # oh*W + ow (drops the wrapped / out-of-window columns produced by the lane rolls).
    # Built with numpy -> baked as a compile-time constant under jit.
    m_idx = np.arange(M)
    sel_np = np.zeros((HW, M), dtype=np.float32)
    sel_np[(m_idx // OW) * W + (m_idx % OW), m_idx] = 1.0
    sel = jnp.asarray(sel_np)

    def kernel(x_ref, w_ref, b_ref, s_ref, o_ref):
        # x_ref: (B*C, H*W)        w_ref: (B*OC, KH*KW*B*C)    b_ref: (B*OC, 1)
        # s_ref: (H*W, OH*OW)      o_ref: (B*OC, OH*OW)
        x = x_ref[...]                                        # (8, 256), lane-dense
        # In-kernel im2col: lane-roll per tap so column h*W + w holds x[.., h+kh, w+kw],
        # then stack all taps along the sublane axis -> (KH*KW*B*C, H*W) = (96, 256).
        # Each piece is exactly one 8-row sublane tile, so the concat is vreg placement,
        # and the rolls run on the XLU (separate bundle slot from the MXU/VPU).
        taps = []
        for j in range(J):                                    # static unroll: 12 taps
            kh, kw = divmod(j, KW)
            s = kh * W + kw
            taps.append(x if s == 0 else pltpu.roll(x, shift=HW - s, axis=1))
        x_im2col = jnp.concatenate(taps, axis=0)              # (96, 256)

        # Whole conv = ONE MXU GEMM: (B*OC, K) @ (K, H*W), K = KH*KW*B*C = 96.
        # Wrapped lanes from the rolls only land in columns the selection matrix drops.
        acc = jnp.dot(w_ref[...], x_im2col,
                      preferred_element_type=jnp.float32)     # (16, 256)

        # Merged epilogue: one bias add, one ReLU, one compaction GEMM, one store.
        y = jnp.maximum(acc + b_ref[...], 0.0)                # (16, 256)
        # 0/1 selection on the (otherwise idle) MXU at HIGHEST precision so compaction does
        # not round the already-computed activations to bf16 (it is tiny, so ~free).
        o_ref[...] = jnp.dot(y, s_ref[...],
                             precision=lax.Precision.HIGHEST,
                             preferred_element_type=jnp.float32).astype(o_ref.dtype)

    flops = 2 * (B * OC) * (J * BC) * HW + 2 * (B * OC) * HW * M
    bytes_accessed = 4 * (BC * HW + (B * OC) * (J * BC) + B * OC + HW * M + (B * OC) * M)

    out = pl.pallas_call(
        kernel,
        out_shape=jax.ShapeDtypeStruct((B * OC, M), inp.dtype),
        in_specs=[
            pl.BlockSpec(memory_space=pltpu.MemorySpace.VMEM),   # x_flat
            pl.BlockSpec(memory_space=pltpu.MemorySpace.VMEM),   # w_big (block-diag)
            pl.BlockSpec(memory_space=pltpu.MemorySpace.VMEM),   # bias
            pl.BlockSpec(memory_space=pltpu.MemorySpace.VMEM),   # selection matrix
        ],
        out_specs=pl.BlockSpec(memory_space=pltpu.MemorySpace.VMEM),
        cost_estimate=pl.CostEstimate(flops=flops, transcendentals=0,
                                      bytes_accessed=bytes_accessed),
    )(x_flat, w_big, b_big, sel)

    # (B*OC, OH*OW) -> (B, OC*OH*OW): exactly PyTorch's channel-major NCHW flatten,
    # and a free contiguous reshape (no transpose, no slice, no extra XLA op).
    return out.reshape(B, OC * M)


def init_params(key, input_dim, output_channel):
    """Deterministic Conv2d-style init (uniform +/- 1/sqrt(fan_in))."""
    in_channel = input_dim[-1]
    KH, KW = 4, 3
    fan_in = in_channel * KH * KW
    bound = 1.0 / (fan_in ** 0.5)
    kw_key, kb_key = jax.random.split(key)
    weight = jax.random.uniform(kw_key, (output_channel, in_channel, KH, KW),
                                jnp.float32, -bound, bound)
    bias = jax.random.uniform(kb_key, (output_channel,), jnp.float32,
                              -bound, bound)
    return weight, bias


if __name__ == "__main__":
    key = jax.random.PRNGKey(0)
    k_in, k_par = jax.random.split(key)

    B, H, W, C = 2, 16, 16, 4      # input_dim = (H, W, C)
    OCH = 8                        # output_channel
    x = jax.random.normal(k_in, (B, H, W, C), jnp.float32)
    weight, bias = init_params(k_par, (H, W, C), OCH)

    fwd = jax.jit(cnn_feature_extraction)
    y = jax.block_until_ready(fwd(x, weight, bias))

    # Pure-JAX reference (same raw-reshape quirk as the module).
    x_nchw = jnp.reshape(x, (B, C, H, W))
    ref = lax.conv_general_dilated(
        x_nchw, weight, window_strides=(1, 1), padding="VALID",
        dimension_numbers=("NCHW", "OIHW", "NCHW"))
    ref = jnp.maximum(ref + bias.reshape(1, OCH, 1, 1), 0.0).reshape(B, -1)

    assert y.shape == ref.shape == (B, OCH * (H - 4 + 1) * (W - 3 + 1)), y.shape
    assert jnp.allclose(y, ref, atol=1e-2, rtol=1e-2)
    print("KERNEL_OK")
</pallas_src>

<mosaic_0001>
module attributes {stable_mosaic.version = 11 : i64} {
  func.func @kernel(%arg0: memref<8x256xf32, #tpu.memory_space<vmem>>, %arg1: memref<16x96xf32, #tpu.memory_space<vmem>>, %arg2: memref<16x1xf32, #tpu.memory_space<vmem>>, %arg3: memref<256x182xf32, #tpu.memory_space<vmem>>, %arg4: memref<16x182xf32, #tpu.memory_space<vmem>>) attributes {dimension_semantics = [], scalar_prefetch = 0 : i64, scratch_operands = 0 : i64, tpu.core_type = #tpu.core_type<tc>} {
    %c0 = arith.constant 0 : index
    %c0_0 = arith.constant 0 : index
    %0 = vector.load %arg0[%c0, %c0_0] : memref<8x256xf32, #tpu.memory_space<vmem>>, vector<8x256xf32>
    %c255_i32 = arith.constant 255 : i32
    %1 = tpu.dynamic_rotate %0 by %c255_i32 dim 1 : vector<8x256xf32>, i32 -> vector<8x256xf32>
    %c254_i32 = arith.constant 254 : i32
    %2 = tpu.dynamic_rotate %0 by %c254_i32 dim 1 : vector<8x256xf32>, i32 -> vector<8x256xf32>
    %c240_i32 = arith.constant 240 : i32
    %3 = tpu.dynamic_rotate %0 by %c240_i32 dim 1 : vector<8x256xf32>, i32 -> vector<8x256xf32>
    %c239_i32 = arith.constant 239 : i32
    %4 = tpu.dynamic_rotate %0 by %c239_i32 dim 1 : vector<8x256xf32>, i32 -> vector<8x256xf32>
    %c238_i32 = arith.constant 238 : i32
    %5 = tpu.dynamic_rotate %0 by %c238_i32 dim 1 : vector<8x256xf32>, i32 -> vector<8x256xf32>
    %c224_i32 = arith.constant 224 : i32
    %6 = tpu.dynamic_rotate %0 by %c224_i32 dim 1 : vector<8x256xf32>, i32 -> vector<8x256xf32>
    %c223_i32 = arith.constant 223 : i32
    %7 = tpu.dynamic_rotate %0 by %c223_i32 dim 1 : vector<8x256xf32>, i32 -> vector<8x256xf32>
    %c222_i32 = arith.constant 222 : i32
    %8 = tpu.dynamic_rotate %0 by %c222_i32 dim 1 : vector<8x256xf32>, i32 -> vector<8x256xf32>
    %c208_i32 = arith.constant 208 : i32
    %9 = tpu.dynamic_rotate %0 by %c208_i32 dim 1 : vector<8x256xf32>, i32 -> vector<8x256xf32>
    %c207_i32 = arith.constant 207 : i32
    %10 = tpu.dynamic_rotate %0 by %c207_i32 dim 1 : vector<8x256xf32>, i32 -> vector<8x256xf32>
    %c206_i32 = arith.constant 206 : i32
    %11 = tpu.dynamic_rotate %0 by %c206_i32 dim 1 : vector<8x256xf32>, i32 -> vector<8x256xf32>
    %12 = tpu.concatenate %0, %1, %2, %3, %4, %5, %6, %7, %8, %9, %10, %11 in 0 : vector<8x256xf32>, vector<8x256xf32>, vector<8x256xf32>, vector<8x256xf32>, vector<8x256xf32>, vector<8x256xf32>, vector<8x256xf32>, vector<8x256xf32>, vector<8x256xf32>, vector<8x256xf32>, vector<8x256xf32>, vector<8x256xf32> -> vector<96x256xf32>
    %c0_1 = arith.constant 0 : index
    %c0_2 = arith.constant 0 : index
    %13 = vector.load %arg1[%c0_1, %c0_2] : memref<16x96xf32, #tpu.memory_space<vmem>>, vector<16x96xf32>
    %cst = arith.constant dense<0.000000e+00> : vector<16x256xf32>
    %14 = tpu.matmul %13, %12, %cst {dimension_numbers = #tpu.dot_dimension_numbers<[1], [0], [0], [1], [0, 0, 1, 1], [], []>} : vector<16x96xf32>, vector<96x256xf32>, vector<16x256xf32> -> vector<16x256xf32>
    %c0_3 = arith.constant 0 : index
    %c0_4 = arith.constant 0 : index
    %15 = vector.load %arg2[%c0_3, %c0_4] : memref<16x1xf32, #tpu.memory_space<vmem>>, vector<16x1xf32>
    %16 = vector.broadcast %15 : vector<16x1xf32> to vector<16x256xf32>
    %17 = arith.addf %14, %16 : vector<16x256xf32>
    %cst_5 = arith.constant 0.000000e+00 : f32
    %18 = vector.broadcast %cst_5 : f32 to vector<16x256xf32>
    %19 = arith.maximumf %17, %18 : vector<16x256xf32>
    %c0_6 = arith.constant 0 : index
    %c0_7 = arith.constant 0 : index
    %20 = vector.load %arg3[%c0_6, %c0_7] : memref<256x182xf32, #tpu.memory_space<vmem>>, vector<256x182xf32>
    %cst_8 = arith.constant dense<0.000000e+00> : vector<16x182xf32>
    %21 = tpu.matmul %19, %20, %cst_8 {dimension_numbers = #tpu.dot_dimension_numbers<[1], [0], [0], [1], [0, 0, 1, 1], [], []>, precision = #tpu.contract_precision<fp32>} : vector<16x256xf32>, vector<256x182xf32>, vector<16x182xf32> -> vector<16x182xf32>
    %c0_9 = arith.constant 0 : index
    %c0_10 = arith.constant 0 : index
    %22 = vector.load %arg4[%c0_9, %c0_10] : memref<16x182xf32, #tpu.memory_space<vmem>>, vector<16x182xf32>
    tpu.vector_store %arg4[%c0_9, %c0_10], %21 {strides = array<i32>} : memref<16x182xf32, #tpu.memory_space<vmem>>, vector<16x182xf32>,
    return
  }
}

</mosaic_0001>

<llo_original>
// kernel: tile.8
$region0: #{tile.8}
  #allocation0 [shape = 's32[1]{0}', space=sflag, size = 0x4, scoped, tag = 'scoped memory for tile.8']
  %s0 = inlined_call_operand.vmem [shape: f32[8], index: 0, kind: input, shape index: {}]
  %s1 = inlined_call_operand.vmem [shape: f32[2,8], index: 1, kind: output, shape index: {}]
  // Predicated region
  $region2: #{tile.8} parent=0 // pred_check
    _
  $region3: #{tile.8} parent=0 // pred_check_branch
    %3 = sbr.rel (0) target = $region5
  $region4: #{tile.8} parent=0 // pred_region
    _
  $region5: #{tile.8} parent=0 // pred_fallthru
    _
  %v4 = vld [vmem:[%s0] ss:$0 sm:$0xff]
  %5 = vst [vmem:[%s1] sm:$0x3] %v4

// kernel: tile.0
$region0: #{tile.0}
  %s0 = inlined_call_operand.vmem [shape: f32[2,8], index: 0, kind: input, shape index: {}]
  %s1 = inlined_call_operand.vmem [shape: f32[16,1], index: 1, kind: output, shape index: {}]
  $region1: #{tile.0} parent=0
    #allocation0 [shape = 'u8[4096]{0}', space=vmem, size = 0x1000, scoped, tag = 'scoped mem for input reshape']
    %s3 = sshll.u32 1, 2
    %s4 = ssub.s32 %s3, 1
    %v5 = vld [vmem:[%s0] sm:%s4]
    %6 = vst [vmem:[#allocation0] sm:%s4] %v5
    %v7 = vld [vmem:[#allocation0] sm:$0x3]
    %vm8 = vcmask 7168
    %9 = vst.msk [vmem:[%s1] ss:$8 sm:$0x3] %vm8, %v7
    %v10 = vld [vmem:[#allocation0] sm:$0x3]
    %11 = vrot.lane.b32.xlu0 %v10, 127
    %v12 = vpop.permute.xlu0 %11
    %vm13 = vcmask 7168
    %s14 = scalar_lea.vmem %s1, 1
    %15 = vst.msk [vmem:[%s14] ss:$8 sm:$0x3] %vm13, %v12
    %v16 = vld [vmem:[#allocation0] sm:$0x3]
    %17 = vrot.lane.b32.xlu0 %v16, 126
    %v18 = vpop.permute.xlu0 %17
    %vm19 = vcmask 7168
    %s20 = scalar_lea.vmem %s1, 2
    %21 = vst.msk [vmem:[%s20] ss:$8 sm:$0x3] %vm19, %v18
    %v22 = vld [vmem:[#allocation0] sm:$0x3]
    %23 = vrot.lane.b32.xlu0 %v22, 125
    %v24 = vpop.permute.xlu0 %23
    %vm25 = vcmask 7168
    %s26 = scalar_lea.vmem %s1, 3
    %27 = vst.msk [vmem:[%s26] ss:$8 sm:$0x3] %vm25, %v24
    %v28 = vld [vmem:[#allocation0] sm:$0x3]
    %29 = vrot.lane.b32.xlu0 %v28, 124
    %v30 = vpop.permute.xlu0 %29
    %vm31 = vcmask 7168
    %s32 = scalar_lea.vmem %s1, 4
    %33 = vst.msk [vmem:[%s32] ss:$8 sm:$0x3] %vm31, %v30
    %v34 = vld [vmem:[#allocation0] sm:$0x3]
    %35 = vrot.lane.b32.xlu0 %v34, 123
    %v36 = vpop.permute.xlu0 %35
    %vm37 = vcmask 7168
    %s38 = scalar_lea.vmem %s1, 5
    %39 = vst.msk [vmem:[%s38] ss:$8 sm:$0x3] %vm37, %v36
    %v40 = vld [vmem:[#allocation0] sm:$0x3]
    %41 = vrot.lane.b32.xlu0 %v40, 122
    %v42 = vpop.permute.xlu0 %41
    %vm43 = vcmask 7168
    %s44 = scalar_lea.vmem %s1, 6
    %45 = vst.msk [vmem:[%s44] ss:$8 sm:$0x3] %vm43, %v42
    %v46 = vld [vmem:[#allocation0] sm:$0x3]
    %47 = vrot.lane.b32.xlu0 %v46, 121
    %v48 = vpop.permute.xlu0 %47
    %vm49 = vcmask 7168
    %s50 = scalar_lea.vmem %s1, 7
    %51 = vst.msk [vmem:[%s50] ss:$8 sm:$0x3] %vm49, %v48

// kernel: cnn_feature_extraction.1
$region0: #{cnn_feature_extraction.1}
  #allocation0 [shape = 'u32[]', space=smem, size = 0x4, offset = 0x4, fixed_abs, tag = 'smem constant byte address 0x4 - core index']
  #allocation1 [shape = 'u32[144,128]{1,0:T(1,128)}', space=vmem, size = 0x12000, scoped, tag = 'internal scratch']
  %s0 = inlined_call_operand.vmem [shape: f32[8,256], index: 0, kind: input, shape index: {}]
  %s1 = inlined_call_operand.vmem [shape: f32[16,96], index: 1, kind: input, shape index: {}]
  %s2 = inlined_call_operand.vmem [shape: f32[16,1], index: 2, kind: input, shape index: {}]
  %s3 = inlined_call_operand.vmem [shape: f32[256,182], index: 3, kind: input, shape index: {}]
  %s4 = inlined_call_operand.vmem [shape: f32[16,182], index: 4, kind: output, shape index: {}]
  %s5 = sld [smem:[#allocation0]]
  $region26: #{cnn_feature_extraction.1} parent=0
    _
  %s7 = ssub.s32 1, %s5
  %s8 = scalar_select 0, %s7, %s5
  // Predicated region
  $region2: #{cnn_feature_extraction.1} parent=0 // pred_check
    _
  $region3: #{cnn_feature_extraction.1} parent=0 // pred_check_branch
    %10 = sbr.rel (0) target = $region5
  $region4: #{cnn_feature_extraction.1} parent=0 // pred_region
    _
  $region5: #{cnn_feature_extraction.1} parent=0 // pred_fallthru
    _
  // Predicated region
  $region6: #{cnn_feature_extraction.1} parent=0 // pred_check
    _
  $region7: #{cnn_feature_extraction.1} parent=0 // pred_check_branch
    %12 = sbr.rel (0) target = $region9
  $region8: #{cnn_feature_extraction.1} parent=0 // pred_region
    _
  $region9: #{cnn_feature_extraction.1} parent=0 // pred_fallthru
    _
  // Predicated region
  $region10: #{cnn_feature_extraction.1} parent=0 // pred_check
    _
  $region11: #{cnn_feature_extraction.1} parent=0 // pred_check_branch
    %14 = sbr.rel (0) target = $region13
  $region12: #{cnn_feature_extraction.1} parent=0 // pred_region
    _
  $region13: #{cnn_feature_extraction.1} parent=0 // pred_fallthru
    _
  // Predicated region
  $region14: #{cnn_feature_extraction.1} parent=0 // pred_check
    _
  $region15: #{cnn_feature_extraction.1} parent=0 // pred_check_branch
    %16 = sbr.rel (0) target = $region17
  $region16: #{cnn_feature_extraction.1} parent=0 // pred_region
    _
  $region17: #{cnn_feature_extraction.1} parent=0 // pred_fallthru
    _
  %v17 = vld [vmem:[%s0] sm:$0xff]
  %v18 = vld [vmem:[%s0 + $0x8] sm:$0xff]
  %19 = vrot.lane.b32.xlu0 %v17, 127
  %v20 = vpop.permute.xlu0 %19
  %21 = vrot.lane.b32.xlu0 %v18, 127
  %v22 = vpop.permute.xlu0 %21
  %v23 = vlaneseq
  %v24 = vand.u32 %v23, 127
  %vm25 = vcmp.lt.s32.totalorder %v24, 127
  %v26 = vsel %vm25, %v20, %v22
  %v27 = vsel %vm25, %v22, %v20
  %28 = vrot.lane.b32.xlu0 %v17, 126
  %v29 = vpop.permute.xlu0 %28
  %30 = vrot.lane.b32.xlu0 %v18, 126
  %v31 = vpop.permute.xlu0 %30
  %vm32 = vcmp.lt.s32.totalorder %v24, 126
  %v33 = vsel %vm32, %v29, %v31
  %v34 = vsel %vm32, %v31, %v29
  %35 = vrot.lane.b32.xlu0 %v17, 112
  %v36 = vpop.permute.xlu0 %35
  %37 = vrot.lane.b32.xlu0 %v18, 112
  %v38 = vpop.permute.xlu0 %37
  %vm39 = vcmp.lt.s32.totalorder %v24, 112
  %v40 = vsel %vm39, %v36, %v38
  %v41 = vsel %vm39, %v38, %v36
  %42 = vrot.lane.b32.xlu0 %v17, 111
  %v43 = vpop.permute.xlu0 %42
  %44 = vrot.lane.b32.xlu0 %v18, 111
  %v45 = vpop.permute.xlu0 %44
  %vm46 = vcmp.lt.s32.totalorder %v24, 111
  %v47 = vsel %vm46, %v43, %v45
  %v48 = vsel %vm46, %v45, %v43
  %49 = vrot.lane.b32.xlu0 %v17, 110
  %v50 = vpop.permute.xlu0 %49
  %51 = vrot.lane.b32.xlu0 %v18, 110
  %v52 = vpop.permute.xlu0 %51
  %vm53 = vcmp.lt.s32.totalorder %v24, 110
  %v54 = vsel %vm53, %v50, %v52
  %v55 = vsel %vm53, %v52, %v50
  %56 = vrot.lane.b32.xlu0 %v17, 96
  %v57 = vpop.permute.xlu0 %56
  %58 = vrot.lane.b32.xlu0 %v18, 96
  %v59 = vpop.permute.xlu0 %58
  %vm60 = vcmp.lt.s32.totalorder %v24, 96
  %v61 = vsel %vm60, %v57, %v59
  %v62 = vsel %vm60, %v59, %v57
  %63 = vrot.lane.b32.xlu0 %v17, 95
  %v64 = vpop.permute.xlu0 %63
  %65 = vrot.lane.b32.xlu0 %v18, 95
  %v66 = vpop.permute.xlu0 %65
  %vm67 = vcmp.lt.s32.totalorder %v24, 95
  %v68 = vsel %vm67, %v64, %v66
  %v69 = vsel %vm67, %v66, %v64
  %70 = vrot.lane.b32.xlu0 %v17, 94
  %v71 = vpop.permute.xlu0 %70
  %72 = vrot.lane.b32.xlu0 %v18, 94
  %v73 = vpop.permute.xlu0 %72
  %vm74 = vcmp.lt.s32.totalorder %v24, 94
  %v75 = vsel %vm74, %v71, %v73
  %v76 = vsel %vm74, %v73, %v71
  %77 = vrot.lane.b32.xlu0 %v17, 80
  %v78 = vpop.permute.xlu0 %77
  %79 = vrot.lane.b32.xlu0 %v18, 80
  %v80 = vpop.permute.xlu0 %79
  %vm81 = vcmp.lt.s32.totalorder %v24, 80
  %v82 = vsel %vm81, %v78, %v80
  %v83 = vsel %vm81, %v80, %v78
  %84 = vrot.lane.b32.xlu0 %v17, 79
  %v85 = vpop.permute.xlu0 %84
  %86 = vrot.lane.b32.xlu0 %v18, 79
  %v87 = vpop.permute.xlu0 %86
  %vm88 = vcmp.lt.s32.totalorder %v24, 79
  %v89 = vsel %vm88, %v85, %v87
  %v90 = vsel %vm88, %v87, %v85
  %91 = vrot.lane.b32.xlu0 %v17, 78
  %v92 = vpop.permute.xlu0 %91
  %93 = vrot.lane.b32.xlu0 %v18, 78
  %v94 = vpop.permute.xlu0 %93
  %vm95 = vcmp.lt.s32.totalorder %v24, 78
  %v96 = vsel %vm95, %v92, %v94
  %v97 = vsel %vm95, %v94, %v92
  %v98 = vld [vmem:[%s1] sm:$0xff]
  %v99 = vld [vmem:[%s1 + $0x8] sm:$0xff]
  %v100 = vld [vmem:[%s2] sm:$0xff]
  %v101 = vld [vmem:[%s2 + $0x8] sm:$0xff]
  %103 = vset.pattern.permute.xlu0 0
  %104 = vperm.xlu0 %103, %v100
  %v105 = vpop.permute.xlu0 %104
  %108 = vset.pattern.permute.xlu0 0
  %109 = vperm.xlu0 %108, %v101
  %v110 = vpop.permute.xlu0 %109
  %vm112 = vcmask 785408
  %v114 = vsel %vm112, %v98, 0
  %v117 = vsel %vm112, %v99, 0
  %119 = vmatprep.subr.mxu0 0.0
  %120 = vmatpush1.msra.mxu0 0.0
  %121 = vmatprep.subr.mxu0 0.0
  %122 = vmatpush1.msra.mxu0 0.0
  %123 = vmatprep.subr.mxu0 0.0
  %124 = vmatpush1.msra.mxu0 0.0
  %125 = vmatprep.subr.mxu0 0.0
  %126 = vmatpush1.msra.mxu0 0.0
  %127 = vmatprep.subr.mxu0 %v97
  %128 = vmatpush1.msra.mxu0 %v96
  %129 = vmatprep.subr.mxu0 %v90
  %130 = vmatpush1.msra.mxu0 %v89
  %131 = vmatprep.subr.mxu0 %v83
  %132 = vmatpush1.msra.mxu0 %v82
  %133 = vmatprep.subr.mxu0 %v76
  %134 = vmatpush1.msra.mxu0 %v75
  %135 = vmatprep.subr.mxu0 %v69
  %136 = vmatpush1.msra.mxu0 %v68
  %137 = vmatprep.subr.mxu0 %v62
  %138 = vmatpush1.msra.mxu0 %v61
  %139 = vmatprep.subr.mxu0 %v55
  %140 = vmatpush1.msra.mxu0 %v54
  %141 = vmatprep.subr.mxu0 %v48
  %142 = vmatpush1.msra.mxu0 %v47
  %143 = vmatprep.subr.mxu0 %v41
  %144 = vmatpush1.msra.mxu0 %v40
  %145 = vmatprep.subr.mxu0 %v34
  %146 = vmatpush1.msra.mxu0 %v33
  %147 = vmatprep.subr.mxu0 %v27
  %148 = vmatpush1.msra.mxu0 %v26
  %149 = vmatprep.subr.mxu0 %v18
  %150 = vmatpush1.msra.mxu0 %v17
  %151 = vmatprep.subr.mxu0 0.0
  %152 = vmatpush2.msra.mxu0 0.0
  %153 = vmatprep.subr.mxu0 0.0
  %154 = vmatpush2.msra.mxu0 0.0
  %155 = vmatprep.subr.mxu0 0.0
  %156 = vmatpush2.msra.mxu0 0.0
  %157 = vmatprep.subr.mxu0 0.0
  %158 = vmatpush2.msra.mxu0 0.0
  %159 = vmatprep.subr.mxu0 0.0
  %160 = vmatpush2.msra.mxu0 0.0
  %161 = vmatprep.subr.mxu0 0.0
  %162 = vmatpush2.msra.mxu0 0.0
  %163 = vmatprep.subr.mxu0 0.0
  %164 = vmatpush2.msra.mxu0 0.0
  %165 = vmatprep.subr.mxu0 0.0
  %166 = vmatpush2.msra.mxu0 0.0
  %167 = vmatprep.subr.mxu0 0.0
  %168 = vmatpush2.msra.mxu0 0.0
  %169 = vmatprep.subr.mxu0 0.0
  %170 = vmatpush2.msra.mxu0 0.0
  %171 = vmatprep.subr.mxu0 0.0
  %172 = vmatpush2.msra.mxu0 0.0
  %173 = vmatprep.subr.mxu0 0.0
  %174 = vmatpush2.msra.mxu0 0.0
  %175 = vmatprep.subr.mxu0 0.0
  %176 = vmatpush2.msra.mxu0 0.0
  %177 = vmatprep.subr.mxu0 0.0
  %178 = vmatpush2.msra.mxu0 0.0
  %179 = vmatprep.subr.mxu0 0.0
  %180 = vmatpush2.msra.mxu0 0.0
  %181 = vmatprep.subr.mxu0 0.0
  %182 = vmatpush2.msra.mxu0 0.0
  %183 = vmatprep.mubr.f32.mxu0 0.0
  %184 = vmatmul.mubr.f32.gmra.mxu0 %v114
  %v185 = vpop.f32.mrf.mxu0
  %v186 = vadd.f32 %v105, %v185
  %v187 = vpop.f32.mrf.mxu0
  %v188 = vadd.f32 %v105, %v187
  %189 = vmatprep.mubr.f32.mxu0 0.0
  %190 = vmatmul.mubr.f32.gmra.mxu0 %v117
  %v191 = vpop.f32.mrf.mxu0
  %v192 = vadd.f32 %v110, %v191
  %v193 = vpop.f32.mrf.mxu0
  %v194 = vadd.f32 %v110, %v193
  %195 = vdwg.mxu0
  %v196 = vmax.f32 %v186, 0.0
  %v197 = vmax.f32 %v188, 0.0
  %v198 = vmax.f32 %v192, 0.0
  %v199 = vmax.f32 %v194, 0.0
  %v200 = vld [vmem:[%s3] sm:$0xff]
  %v201 = vld [vmem:[%s3 + $0x8] sm:$0xff]
  %v202 = vld [vmem:[%s3 + $0x10] sm:$0xff]
  %v203 = vld [vmem:[%s3 + $0x18] sm:$0xff]
  %v204 = vld [vmem:[%s3 + $0x20] sm:$0xff]
  %v205 = vld [vmem:[%s3 + $0x28] sm:$0xff]
  %v206 = vld [vmem:[%s3 + $0x30] sm:$0xff]
  %v207 = vld [vmem:[%s3 + $0x38] sm:$0xff]
  %v208 = vld [vmem:[%s3 + $0x40] sm:$0xff]
  %v209 = vld [vmem:[%s3 + $0x48] sm:$0xff]
  %v210 = vld [vmem:[%s3 + $0x50] sm:$0xff]
  %v211 = vld [vmem:[%s3 + $0x58] sm:$0xff]
  %v212 = vld [vmem:[%s3 + $0x60] sm:$0xff]
  %v213 = vld [vmem:[%s3 + $0x68] sm:$0xff]
  %v214 = vld [vmem:[%s3 + $0x70] sm:$0xff]
  %v215 = vld [vmem:[%s3 + $0x78] sm:$0xff]
  %v216 = vld [vmem:[%s3 + $0x80] sm:$0xff]
  %v217 = vld [vmem:[%s3 + $0x88] sm:$0xff]
  %v218 = vld [vmem:[%s3 + $0x90] sm:$0xff]
  %v219 = vld [vmem:[%s3 + $0x98] sm:$0xff]
  %v220 = vld [vmem:[%s3 + $0xa0] sm:$0xff]
  %v221 = vld [vmem:[%s3 + $0xa8] sm:$0xff]
  %v222 = vld [vmem:[%s3 + $0xb0] sm:$0xff]
  %v223 = vld [vmem:[%s3 + $0xb8] sm:$0xff]
  %v224 = vld [vmem:[%s3 + $0xc0] sm:$0xff]
  %v225 = vld [vmem:[%s3 + $0xc8] sm:$0xff]
  %v226 = vld [vmem:[%s3 + $0xd0] sm:$0xff]
  %v227 = vld [vmem:[%s3 + $0xd8] sm:$0xff]
  %v228 = vld [vmem:[%s3 + $0xe0] sm:$0xff]
  %v229 = vld [vmem:[%s3 + $0xe8] sm:$0xff]
  %v230 = vld [vmem:[%s3 + $0xf0] sm:$0xff]
  %v231 = vld [vmem:[%s3 + $0xf8] sm:$0xff]
  %v232 = vld [vmem:[%s3 + $0x100] sm:$0xff]
  %v233 = vld [vmem:[%s3 + $0x108] sm:$0xff]
  %v234 = vld [vmem:[%s3 + $0x110] sm:$0xff]
  %v235 = vld [vmem:[%s3 + $0x118] sm:$0xff]
  %v236 = vld [vmem:[%s3 + $0x120] sm:$0xff]
  %v237 = vld [vmem:[%s3 + $0x128] sm:$0xff]
  %v238 = vld [vmem:[%s3 + $0x130] sm:$0xff]
  %v239 = vld [vmem:[%s3 + $0x138] sm:$0xff]
  %v240 = vld [vmem:[%s3 + $0x140] sm:$0xff]
  %v241 = vld [vmem:[%s3 + $0x148] sm:$0xff]
  %v242 = vld [vmem:[%s3 + $0x150] sm:$0xff]
  %v243 = vld [vmem:[%s3 + $0x158] sm:$0xff]
  %v244 = vld [vmem:[%s3 + $0x160] sm:$0xff]
  %v245 = vld [vmem:[%s3 + $0x168] sm:$0xff]
  %v246 = vld [vmem:[%s3 + $0x170] sm:$0xff]
  %v247 = vld [vmem:[%s3 + $0x178] sm:$0xff]
  %v248 = vld [vmem:[%s3 + $0x180] sm:$0xff]
  %v249 = vld [vmem:[%s3 + $0x188] sm:$0xff]
  %v250 = vld [vmem:[%s3 + $0x190] sm:$0xff]
  %v251 = vld [vmem:[%s3 + $0x198] sm:$0xff]
  %v252 = vld [vmem:[%s3 + $0x1a0] sm:$0xff]
  %v253 = vld [vmem:[%s3 + $0x1a8] sm:$0xff]
  %v254 = vld [vmem:[%s3 + $0x1b0] sm:$0xff]
  %v255 = vld [vmem:[%s3 + $0x1b8] sm:$0xff]
  %v256 = vld [vmem:[%s3 + $0x1c0] sm:$0xff]
  %v257 = vld [vmem:[%s3 + $0x1c8] sm:$0xff]
  %v258 = vld [vmem:[%s3 + $0x1d0] sm:$0xff]
  %v259 = vld [vmem:[%s3 + $0x1d8] sm:$0xff]
  %v260 = vld [vmem:[%s3 + $0x1e0] sm:$0xff]
  %v261 = vld [vmem:[%s3 + $0x1e8] sm:$0xff]
  %v262 = vld [vmem:[%s3 + $0x1f0] sm:$0xff]
  %v263 = vld [vmem:[%s3 + $0x1f8] sm:$0xff]
  %v264 = vand.u32 %v231, 4294901760
  %265 = vmatprep.subr.mxu0 %v264
  %v266 = vand.u32 %v230, 4294901760
  %267 = vmatpush1.msra.mxu0 %v266
  %v268 = vand.u32 %v229, 4294901760
  %269 = vmatprep.subr.mxu0 %v268
  %v270 = vand.u32 %v228, 4294901760
  %271 = vmatpush1.msra.mxu0 %v270
  %v272 = vand.u32 %v227, 4294901760
  %273 = vmatprep.subr.mxu0 %v272
  %v274 = vand.u32 %v226, 4294901760
  %275 = vmatpush1.msra.mxu0 %v274
  %v276 = vand.u32 %v225, 4294901760
  %277 = vmatprep.subr.mxu0 %v276
  %v278 = vand.u32 %v224, 4294901760
  %279 = vmatpush1.msra.mxu0 %v278
  %v280 = vand.u32 %v223, 4294901760
  %281 = vmatprep.subr.mxu0 %v280
  %v282 = vand.u32 %v222, 4294901760
  %283 = vmatpush1.msra.mxu0 %v282
  %v284 = vand.u32 %v221, 4294901760
  %285 = vmatprep.subr.mxu0 %v284
  %v286 = vand.u32 %v220, 4294901760
  %287 = vmatpush1.msra.mxu0 %v286
  %v288 = vand.u32 %v219, 4294901760
  %289 = vmatprep.subr.mxu0 %v288
  %v290 = vand.u32 %v218, 4294901760
  %291 = vmatpush1.msra.mxu0 %v290
  %v292 = vand.u32 %v217, 4294901760
  %293 = vmatprep.subr.mxu0 %v292
  %v294 = vand.u32 %v216, 4294901760
  %295 = vmatpush1.msra.mxu0 %v294
  %v296 = vand.u32 %v215, 4294901760
  %297 = vmatprep.subr.mxu0 %v296
  %v298 = vand.u32 %v214, 4294901760
  %299 = vmatpush1.msra.mxu0 %v298
  %v300 = vand.u32 %v213, 4294901760
  %301 = vmatprep.subr.mxu0 %v300
  %v302 = vand.u32 %v212, 4294901760
  %303 = vmatpush1.msra.mxu0 %v302
  %v304 = vand.u32 %v211, 4294901760
  %305 = vmatprep.subr.mxu0 %v304
  %v306 = vand.u32 %v210, 4294901760
  %307 = vmatpush1.msra.mxu0 %v306
  %v308 = vand.u32 %v209, 4294901760
  %309 = vmatprep.subr.mxu0 %v308
  %v310 = vand.u32 %v208, 4294901760
  %311 = vmatpush1.msra.mxu0 %v310
  %v312 = vand.u32 %v207, 4294901760
  %313 = vmatprep.subr.mxu0 %v312
  %v314 = vand.u32 %v206, 4294901760
  %315 = vmatpush1.msra.mxu0 %v314
  %v316 = vand.u32 %v205, 4294901760
  %317 = vmatprep.subr.mxu0 %v316
  %v318 = vand.u32 %v204, 4294901760
  %319 = vmatpush1.msra.mxu0 %v318
  %v320 = vand.u32 %v203, 4294901760
  %321 = vmatprep.subr.mxu0 %v320
  %v322 = vand.u32 %v202, 4294901760
  %323 = vmatpush1.msra.mxu0 %v322
  %v324 = vand.u32 %v201, 4294901760
  %325 = vmatprep.subr.mxu0 %v324
  %v326 = vand.u32 %v200, 4294901760
  %327 = vmatpush1.msra.mxu0 %v326
  %v328 = vand.u32 %v263, 4294901760
  %329 = vmatprep.subr.mxu0 %v328
  %v330 = vand.u32 %v262, 4294901760
  %331 = vmatpush2.msra.mxu0 %v330
  %v332 = vand.u32 %v261, 4294901760
  %333 = vmatprep.subr.mxu0 %v332
  %v334 = vand.u32 %v260, 4294901760
  %335 = vmatpush2.msra.mxu0 %v334
  %v336 = vand.u32 %v259, 4294901760
  %337 = vmatprep.subr.mxu0 %v336
  %v338 = vand.u32 %v258, 4294901760
  %339 = vmatpush2.msra.mxu0 %v338
  %v340 = vand.u32 %v257, 4294901760
  %341 = vmatprep.subr.mxu0 %v340
  %v342 = vand.u32 %v256, 4294901760
  %343 = vmatpush2.msra.mxu0 %v342
  %v344 = vand.u32 %v255, 4294901760
  %345 = vmatprep.subr.mxu0 %v344
  %v346 = vand.u32 %v254, 4294901760
  %347 = vmatpush2.msra.mxu0 %v346
  %v348 = vand.u32 %v253, 4294901760
  %349 = vmatprep.subr.mxu0 %v348
  %v350 = vand.u32 %v252, 4294901760
  %351 = vmatpush2.msra.mxu0 %v350
  %v352 = vand.u32 %v251, 4294901760
  %353 = vmatprep.subr.mxu0 %v352
  %v354 = vand.u32 %v250, 4294901760
  %355 = vmatpush2.msra.mxu0 %v354
  %v356 = vand.u32 %v249, 4294901760
  %357 = vmatprep.subr.mxu0 %v356
  %v358 = vand.u32 %v248, 4294901760
  %359 = vmatpush2.msra.mxu0 %v358
  %v360 = vand.u32 %v247, 4294901760
  %361 = vmatprep.subr.mxu0 %v360
  %v362 = vand.u32 %v246, 4294901760
  %363 = vmatpush2.msra.mxu0 %v362
  %v364 = vand.u32 %v245, 4294901760
  %365 = vmatprep.subr.mxu0 %v364
  %v366 = vand.u32 %v244, 4294901760
  %367 = vmatpush2.msra.mxu0 %v366
  %v368 = vand.u32 %v243, 4294901760
  %369 = vmatprep.subr.mxu0 %v368
  %v370 = vand.u32 %v242, 4294901760
  %371 = vmatpush2.msra.mxu0 %v370
  %v372 = vand.u32 %v241, 4294901760
  %373 = vmatprep.subr.mxu0 %v372
  %v374 = vand.u32 %v240, 4294901760
  %375 = vmatpush2.msra.mxu0 %v374
  %v376 = vand.u32 %v239, 4294901760
  %377 = vmatprep.subr.mxu0 %v376
  %v378 = vand.u32 %v238, 4294901760
  %379 = vmatpush2.msra.mxu0 %v378
  %v380 = vand.u32 %v237, 4294901760
  %381 = vmatprep.subr.mxu0 %v380
  %v382 = vand.u32 %v236, 4294901760
  %383 = vmatpush2.msra.mxu0 %v382
  %v384 = vand.u32 %v235, 4294901760
  %385 = vmatprep.subr.mxu0 %v384
  %v386 = vand.u32 %v234, 4294901760
  %387 = vmatpush2.msra.mxu0 %v386
  %v388 = vand.u32 %v233, 4294901760
  %389 = vmatprep.subr.mxu0 %v388
  %v390 = vand.u32 %v232, 4294901760
  %391 = vmatpush2.msra.mxu0 %v390
  %v392 = vand.u32 %v197, 4294901760
  %v393 = vsub.f32 %v197, %v392
  %v394 = vand.u32 %v393, 4294901760
  %v395 = vsub.f32 %v393, %v394
  %v396 = vand.u32 %v395, 4294901760
  %397 = vmatprep.mubr.f32.mxu0 %v396
  %v398 = vand.u32 %v196, 4294901760
  %v399 = vsub.f32 %v196, %v398
  %v400 = vand.u32 %v399, 4294901760
  %v401 = vsub.f32 %v399, %v400
  %v402 = vand.u32 %v401, 4294901760
  %403 = vmatmul.mubr.f32.gmra.mxu0 %v402
  %v404 = vpop.f32.mrf.mxu0
  %v405 = vadd.f32 0.0, %v404
  %v406 = vpop.f32.mrf.mxu0
  %v407 = vadd.f32 0.0, %v406
  %v408 = vand.u32 %v199, 4294901760
  %v409 = vsub.f32 %v199, %v408
  %v410 = vand.u32 %v409, 4294901760
  %v411 = vsub.f32 %v409, %v410
  %v412 = vand.u32 %v411, 4294901760
  %413 = vmatprep.mubr.f32.mxu0 %v412
  %v414 = vand.u32 %v198, 4294901760
  %v415 = vsub.f32 %v198, %v414
  %v416 = vand.u32 %v415, 4294901760
  %v417 = vsub.f32 %v415, %v416
  %v418 = vand.u32 %v417, 4294901760
  %419 = vmatmul.mubr.f32.gmra.mxu0 %v418
  %v420 = vpop.f32.mrf.mxu0
  %v421 = vadd.f32 0.0, %v420
  %v422 = vpop.f32.mrf.mxu0
  %v423 = vadd.f32 0.0, %v422
  %424 = vdwg.mxu0
  %v425 = vand.u32 %v231, 4294901760
  %v426 = vsub.f32 %v231, %v425
  %v427 = vand.u32 %v426, 4294901760
  %v428 = vsub.f32 %v426, %v427
  %v429 = vand.u32 %v428, 4294901760
  %430 = vmatprep.subr.mxu0 %v429
  %v431 = vand.u32 %v230, 4294901760
  %v432 = vsub.f32 %v230, %v431
  %v433 = vand.u32 %v432, 4294901760
  %v434 = vsub.f32 %v432, %v433
  %v435 = vand.u32 %v434, 4294901760
  %436 = vmatpush1.msra.mxu0 %v435
  %v437 = vand.u32 %v229, 4294901760
  %v438 = vsub.f32 %v229, %v437
  %v439 = vand.u32 %v438, 4294901760
  %v440 = vsub.f32 %v438, %v439
  %v441 = vand.u32 %v440, 4294901760
  %442 = vmatprep.subr.mxu0 %v441
  %v443 = vand.u32 %v228, 4294901760
  %v444 = vsub.f32 %v228, %v443
  %v445 = vand.u32 %v444, 4294901760
  %v446 = vsub.f32 %v444, %v445
  %v447 = vand.u32 %v446, 4294901760
  %448 = vmatpush1.msra.mxu0 %v447
  %v449 = vand.u32 %v227, 4294901760
  %v450 = vsub.f32 %v227, %v449
  %v451 = vand.u32 %v450, 4294901760
  %v452 = vsub.f32 %v450, %v451
  %v453 = vand.u32 %v452, 4294901760
  %454 = vmatprep.subr.mxu0 %v453
  %v455 = vand.u32 %v226, 4294901760
  %v456 = vsub.f32 %v226, %v455
  %v457 = vand.u32 %v456, 4294901760
  %v458 = vsub.f32 %v456, %v457
  %v459 = vand.u32 %v458, 4294901760
  %460 = vmatpush1.msra.mxu0 %v459
  %v461 = vand.u32 %v225, 4294901760
  %v462 = vsub.f32 %v225, %v461
  %v463 = vand.u32 %v462, 4294901760
  %v464 = vsub.f32 %v462, %v463
  %v465 = vand.u32 %v464, 4294901760
  %466 = vmatprep.subr.mxu0 %v465
  %v467 = vand.u32 %v224, 4294901760
  %v468 = vsub.f32 %v224, %v467
  %v469 = vand.u32 %v468, 4294901760
  %v470 = vsub.f32 %v468, %v469
  %v471 = vand.u32 %v470, 4294901760
  %472 = vmatpush1.msra.mxu0 %v471
  %v473 = vand.u32 %v223, 4294901760
  %v474 = vsub.f32 %v223, %v473
  %v475 = vand.u32 %v474, 4294901760
  %v476 = vsub.f32 %v474, %v475
  %v477 = vand.u32 %v476, 4294901760
  %478 = vmatprep.subr.mxu0 %v477
  %v479 = vand.u32 %v222, 4294901760
  %v480 = vsub.f32 %v222, %v479
  %v481 = vand.u32 %v480, 4294901760
  %v482 = vsub.f32 %v480, %v481
  %v483 = vand.u32 %v482, 4294901760
  %484 = vmatpush1.msra.mxu0 %v483
  %v485 = vand.u32 %v221, 4294901760
  %v486 = vsub.f32 %v221, %v485
  %v487 = vand.u32 %v486, 4294901760
  %v488 = vsub.f32 %v486, %v487
  %v489 = vand.u32 %v488, 4294901760
  %490 = vmatprep.subr.mxu0 %v489
  %v491 = vand.u32 %v220, 4294901760
  %v492 = vsub.f32 %v220, %v491
  %v493 = vand.u32 %v492, 4294901760
  %v494 = vsub.f32 %v492, %v493
  %v495 = vand.u32 %v494, 4294901760
  %496 = vmatpush1.msra.mxu0 %v495
  %v497 = vand.u32 %v219, 4294901760
  %v498 = vsub.f32 %v219, %v497
  %v499 = vand.u32 %v498, 4294901760
  %v500 = vsub.f32 %v498, %v499
  %v501 = vand.u32 %v500, 4294901760
  %502 = vmatprep.subr.mxu0 %v501
  %v503 = vand.u32 %v218, 4294901760
  %v504 = vsub.f32 %v218, %v503
  %v505 = vand.u32 %v504, 4294901760
  %v506 = vsub.f32 %v504, %v505
  %v507 = vand.u32 %v506, 4294901760
  %508 = vmatpush1.msra.mxu0 %v507
  %v509 = vand.u32 %v217, 4294901760
  %v510 = vsub.f32 %v217, %v509
  %v511 = vand.u32 %v510, 4294901760
  %v512 = vsub.f32 %v510, %v511
  %v513 = vand.u32 %v512, 4294901760
  %514 = vmatprep.subr.mxu0 %v513
  %v515 = vand.u32 %v216, 4294901760
  %v516 = vsub.f32 %v216, %v515
  %v517 = vand.u32 %v516, 4294901760
  %v518 = vsub.f32 %v516, %v517
  %v519 = vand.u32 %v518, 4294901760
  %520 = vmatpush1.msra.mxu0 %v519
  %v521 = vand.u32 %v215, 4294901760
  %v522 = vsub.f32 %v215, %v521
  %v523 = vand.u32 %v522, 4294901760
  %v524 = vsub.f32 %v522, %v523
  %v525 = vand.u32 %v524, 4294901760
  %526 = vmatprep.subr.mxu0 %v525
  %v527 = vand.u32 %v214, 4294901760
  %v528 = vsub.f32 %v214, %v527
  %v529 = vand.u32 %v528, 4294901760
  %v530 = vsub.f32 %v528, %v529
  %v531 = vand.u32 %v530, 4294901760
  %532 = vmatpush1.msra.mxu0 %v531
  %v533 = vand.u32 %v213, 4294901760
  %v534 = vsub.f32 %v213, %v533
  %v535 = vand.u32 %v534, 4294901760
  %v536 = vsub.f32 %v534, %v535
  %v537 = vand.u32 %v536, 4294901760
  %538 = vmatprep.subr.mxu0 %v537
  %v539 = vand.u32 %v212, 4294901760
  %v540 = vsub.f32 %v212, %v539
  %v541 = vand.u32 %v540, 4294901760
  %v542 = vsub.f32 %v540, %v541
  %v543 = vand.u32 %v542, 4294901760
  %544 = vmatpush1.msra.mxu0 %v543
  %v545 = vand.u32 %v211, 4294901760
  %v546 = vsub.f32 %v211, %v545
  %v547 = vand.u32 %v546, 4294901760
  %v548 = vsub.f32 %v546, %v547
  %v549 = vand.u32 %v548, 4294901760
  %550 = vmatprep.subr.mxu0 %v549
  %v551 = vand.u32 %v210, 4294901760
  %v552 = vsub.f32 %v210, %v551
  %v553 = vand.u32 %v552, 4294901760
  %v554 = vsub.f32 %v552, %v553
  %v555 = vand.u32 %v554, 4294901760
  %556 = vmatpush1.msra.mxu0 %v555
  %v557 = vand.u32 %v209, 4294901760
  %v558 = vsub.f32 %v209, %v557
  %v559 = vand.u32 %v558, 4294901760
  %v560 = vsub.f32 %v558, %v559
  %v561 = vand.u32 %v560, 4294901760
  %562 = vmatprep.subr.mxu0 %v561
  %v563 = vand.u32 %v208, 4294901760
  %v564 = vsub.f32 %v208, %v563
  %v565 = vand.u32 %v564, 4294901760
  %v566 = vsub.f32 %v564, %v565
  %v567 = vand.u32 %v566, 4294901760
  %568 = vmatpush1.msra.mxu0 %v567
  %v569 = vand.u32 %v207, 4294901760
  %v570 = vsub.f32 %v207, %v569
  %v571 = vand.u32 %v570, 4294901760
  %v572 = vsub.f32 %v570, %v571
  %v573 = vand.u32 %v572, 4294901760
  %574 = vmatprep.subr.mxu0 %v573
  %v575 = vand.u32 %v206, 4294901760
  %v576 = vsub.f32 %v206, %v575
  %v577 = vand.u32 %v576, 4294901760
  %v578 = vsub.f32 %v576, %v577
  %v579 = vand.u32 %v578, 4294901760
  %580 = vmatpush1.msra.mxu0 %v579
  %v581 = vand.u32 %v205, 4294901760
  %v582 = vsub.f32 %v205, %v581
  %v583 = vand.u32 %v582, 4294901760
  %v584 = vsub.f32 %v582, %v583
  %v585 = vand.u32 %v584, 4294901760
  %586 = vmatprep.subr.mxu0 %v585
  %v587 = vand.u32 %v204, 4294901760
  %v588 = vsub.f32 %v204, %v587
  %v589 = vand.u32 %v588, 4294901760
  %v590 = vsub.f32 %v588, %v589
  %v591 = vand.u32 %v590, 4294901760
  %592 = vmatpush1.msra.mxu0 %v591
  %v593 = vand.u32 %v203, 4294901760
  %v594 = vsub.f32 %v203, %v593
  %v595 = vand.u32 %v594, 4294901760
  %v596 = vsub.f32 %v594, %v595
  %v597 = vand.u32 %v596, 4294901760
  %598 = vmatprep.subr.mxu0 %v597
  %v599 = vand.u32 %v202, 4294901760
  %v600 = vsub.f32 %v202, %v599
  %v601 = vand.u32 %v600, 4294901760
  %v602 = vsub.f32 %v600, %v601
  %v603 = vand.u32 %v602, 4294901760
  %604 = vmatpush1.msra.mxu0 %v603
  %v605 = vand.u32 %v201, 4294901760
  %v606 = vsub.f32 %v201, %v605
  %v607 = vand.u32 %v606, 4294901760
  %v608 = vsub.f32 %v606, %v607
  %v609 = vand.u32 %v608, 4294901760
  %610 = vmatprep.subr.mxu0 %v609
  %v611 = vand.u32 %v200, 4294901760
  %v612 = vsub.f32 %v200, %v611
  %v613 = vand.u32 %v612, 4294901760
  %v614 = vsub.f32 %v612, %v613
  %v615 = vand.u32 %v614, 4294901760
  %616 = vmatpush1.msra.mxu0 %v615
  %v617 = vand.u32 %v263, 4294901760
  %v618 = vsub.f32 %v263, %v617
  %v619 = vand.u32 %v618, 4294901760
  %v620 = vsub.f32 %v618, %v619
  %v621 = vand.u32 %v620, 4294901760
  %622 = vmatprep.subr.mxu0 %v621
  %v623 = vand.u32 %v262, 4294901760
  %v624 = vsub.f32 %v262, %v623
  %v625 = vand.u32 %v624, 4294901760
  %v626 = vsub.f32 %v624, %v625
  %v627 = vand.u32 %v626, 4294901760
  %628 = vmatpush2.msra.mxu0 %v627
  %v629 = vand.u32 %v261, 4294901760
  %v630 = vsub.f32 %v261, %v629
  %v631 = vand.u32 %v630, 4294901760
  %v632 = vsub.f32 %v630, %v631
  %v633 = vand.u32 %v632, 4294901760
  %634 = vmatprep.subr.mxu0 %v633
  %v635 = vand.u32 %v260, 4294901760
  %v636 = vsub.f32 %v260, %v635
  %v637 = vand.u32 %v636, 4294901760
  %v638 = vsub.f32 %v636, %v637
  %v639 = vand.u32 %v638, 4294901760
  %640 = vmatpush2.msra.mxu0 %v639
  %v641 = vand.u32 %v259, 4294901760
  %v642 = vsub.f32 %v259, %v641
  %v643 = vand.u32 %v642, 4294901760
  %v644 = vsub.f32 %v642, %v643
  %v645 = vand.u32 %v644, 4294901760
  %646 = vmatprep.subr.mxu0 %v645
  %v647 = vand.u32 %v258, 4294901760
  %v648 = vsub.f32 %v258, %v647
  %v649 = vand.u32 %v648, 4294901760
  %v650 = vsub.f32 %v648, %v649
  %v651 = vand.u32 %v650, 4294901760
  %652 = vmatpush2.msra.mxu0 %v651
  %v653 = vand.u32 %v257, 4294901760
  %v654 = vsub.f32 %v257, %v653
  %v655 = vand.u32 %v654, 4294901760
  %v656 = vsub.f32 %v654, %v655
  %v657 = vand.u32 %v656, 4294901760
  %658 = vmatprep.subr.mxu0 %v657
  %v659 = vand.u32 %v256, 4294901760
  %v660 = vsub.f32 %v256, %v659
  %v661 = vand.u32 %v660, 4294901760
  %v662 = vsub.f32 %v660, %v661
  %v663 = vand.u32 %v662, 4294901760
  %664 = vmatpush2.msra.mxu0 %v663
  %v665 = vand.u32 %v255, 4294901760
  %v666 = vsub.f32 %v255, %v665
  %v667 = vand.u32 %v666, 4294901760
  %v668 = vsub.f32 %v666, %v667
  %v669 = vand.u32 %v668, 4294901760
  %670 = vmatprep.subr.mxu0 %v669
  %v671 = vand.u32 %v254, 4294901760
  %v672 = vsub.f32 %v254, %v671
  %v673 = vand.u32 %v672, 4294901760
  %v674 = vsub.f32 %v672, %v673
  %v675 = vand.u32 %v674, 4294901760
  %676 = vmatpush2.msra.mxu0 %v675
  %v677 = vand.u32 %v253, 4294901760
  %v678 = vsub.f32 %v253, %v677
  %v679 = vand.u32 %v678, 4294901760
  %v680 = vsub.f32 %v678, %v679
  %v681 = vand.u32 %v680, 4294901760
  %682 = vmatprep.subr.mxu0 %v681
  %v683 = vand.u32 %v252, 4294901760
  %v684 = vsub.f32 %v252, %v683
  %v685 = vand.u32 %v684, 4294901760
  %v686 = vsub.f32 %v684, %v685
  %v687 = vand.u32 %v686, 4294901760
  %688 = vmatpush2.msra.mxu0 %v687
  %v689 = vand.u32 %v251, 4294901760
  %v690 = vsub.f32 %v251, %v689
  %v691 = vand.u32 %v690, 4294901760
  %v692 = vsub.f32 %v690, %v691
  %v693 = vand.u32 %v692, 4294901760
  %694 = vmatprep.subr.mxu0 %v693
  %v695 = vand.u32 %v250, 4294901760
  %v696 = vsub.f32 %v250, %v695
  %v697 = vand.u32 %v696, 4294901760
  %v698 = vsub.f32 %v696, %v697
  %v699 = vand.u32 %v698, 4294901760
  %700 = vmatpush2.msra.mxu0 %v699
  %v701 = vand.u32 %v249, 4294901760
  %v702 = vsub.f32 %v249, %v701
  %v703 = vand.u32 %v702, 4294901760
  %v704 = vsub.f32 %v702, %v703
  %v705 = vand.u32 %v704, 4294901760
  %706 = vmatprep.subr.mxu0 %v705
  %v707 = vand.u32 %v248, 4294901760
  %v708 = vsub.f32 %v248, %v707
  %v709 = vand.u32 %v708, 4294901760
  %v710 = vsub.f32 %v708, %v709
  %v711 = vand.u32 %v710, 4294901760
  %712 = vmatpush2.msra.mxu0 %v711
  %v713 = vand.u32 %v247, 4294901760
  %v714 = vsub.f32 %v247, %v713
  %v715 = vand.u32 %v714, 4294901760
  %v716 = vsub.f32 %v714, %v715
  %v717 = vand.u32 %v716, 4294901760
  %718 = vmatprep.subr.mxu0 %v717
  %v719 = vand.u32 %v246, 4294901760
  %v720 = vsub.f32 %v246, %v719
  %v721 = vand.u32 %v720, 4294901760
  %v722 = vsub.f32 %v720, %v721
  %v723 = vand.u32 %v722, 4294901760
  %724 = vmatpush2.msra.mxu0 %v723
  %v725 = vand.u32 %v245, 4294901760
  %v726 = vsub.f32 %v245, %v725
  %v727 = vand.u32 %v726, 4294901760
  %v728 = vsub.f32 %v726, %v727
  %v729 = vand.u32 %v728, 4294901760
  %730 = vmatprep.subr.mxu0 %v729
  %v731 = vand.u32 %v244, 4294901760
  %v732 = vsub.f32 %v244, %v731
  %v733 = vand.u32 %v732, 4294901760
  %v734 = vsub.f32 %v732, %v733
  %v735 = vand.u32 %v734, 4294901760
  %736 = vmatpush2.msra.mxu0 %v735
  %v737 = vand.u32 %v243, 4294901760
  %v738 = vsub.f32 %v243, %v737
  %v739 = vand.u32 %v738, 4294901760
  %v740 = vsub.f32 %v738, %v739
  %v741 = vand.u32 %v740, 4294901760
  %742 = vmatprep.subr.mxu0 %v741
  %v743 = vand.u32 %v242, 4294901760
  %v744 = vsub.f32 %v242, %v743
  %v745 = vand.u32 %v744, 4294901760
  %v746 = vsub.f32 %v744, %v745
  %v747 = vand.u32 %v746, 4294901760
  %748 = vmatpush2.msra.mxu0 %v747
  %v749 = vand.u32 %v241, 4294901760
  %v750 = vsub.f32 %v241, %v749
  %v751 = vand.u32 %v750, 4294901760
  %v752 = vsub.f32 %v750, %v751
  %v753 = vand.u32 %v752, 4294901760
  %754 = vmatprep.subr.mxu0 %v753
  %v755 = vand.u32 %v240, 4294901760
  %v756 = vsub.f32 %v240, %v755
  %v757 = vand.u32 %v756, 4294901760
  %v758 = vsub.f32 %v756, %v757
  %v759 = vand.u32 %v758, 4294901760
  %760 = vmatpush2.msra.mxu0 %v759
  %v761 = vand.u32 %v239, 4294901760
  %v762 = vsub.f32 %v239, %v761
  %v763 = vand.u32 %v762, 4294901760
  %v764 = vsub.f32 %v762, %v763
  %v765 = vand.u32 %v764, 4294901760
  %766 = vmatprep.subr.mxu0 %v765
  %v767 = vand.u32 %v238, 4294901760
  %v768 = vsub.f32 %v238, %v767
  %v769 = vand.u32 %v768, 4294901760
  %v770 = vsub.f32 %v768, %v769
  %v771 = vand.u32 %v770, 4294901760
  %772 = vmatpush2.msra.mxu0 %v771
  %v773 = vand.u32 %v237, 4294901760
  %v774 = vsub.f32 %v237, %v773
  %v775 = vand.u32 %v774, 4294901760
  %v776 = vsub.f32 %v774, %v775
  %v777 = vand.u32 %v776, 4294901760
  %778 = vmatprep.subr.mxu0 %v777
  %v779 = vand.u32 %v236, 4294901760
  %v780 = vsub.f32 %v236, %v779
  %v781 = vand.u32 %v780, 4294901760
  %v782 = vsub.f32 %v780, %v781
  %v783 = vand.u32 %v782, 4294901760
  %784 = vmatpush2.msra.mxu0 %v783
  %v785 = vand.u32 %v235, 4294901760
  %v786 = vsub.f32 %v235, %v785
  %v787 = vand.u32 %v786, 4294901760
  %v788 = vsub.f32 %v786, %v787
  %v789 = vand.u32 %v788, 4294901760
  %790 = vmatprep.subr.mxu0 %v789
  %v791 = vand.u32 %v234, 4294901760
  %v792 = vsub.f32 %v234, %v791
  %v793 = vand.u32 %v792, 4294901760
  %v794 = vsub.f32 %v792, %v793
  %v795 = vand.u32 %v794, 4294901760
  %796 = vmatpush2.msra.mxu0 %v795
  %v797 = vand.u32 %v233, 4294901760
  %v798 = vsub.f32 %v233, %v797
  %v799 = vand.u32 %v798, 4294901760
  %v800 = vsub.f32 %v798, %v799
  %v801 = vand.u32 %v800, 4294901760
  %802 = vmatprep.subr.mxu0 %v801
  %v803 = vand.u32 %v232, 4294901760
  %v804 = vsub.f32 %v232, %v803
  %v805 = vand.u32 %v804, 4294901760
  %v806 = vsub.f32 %v804, %v805
  %v807 = vand.u32 %v806, 4294901760
  %808 = vmatpush2.msra.mxu0 %v807
  %v809 = vand.u32 %v197, 4294901760
  %810 = vmatprep.mubr.f32.mxu0 %v809
  %v811 = vand.u32 %v196, 4294901760
  %812 = vmatmul.mubr.f32.gmra.mxu0 %v811
  %v813 = vpop.f32.mrf.mxu0
  %v814 = vadd.f32 %v405, %v813
  %v815 = vpop.f32.mrf.mxu0
  %v816 = vadd.f32 %v407, %v815
  %v817 = vand.u32 %v199, 4294901760
  %818 = vmatprep.mubr.f32.mxu0 %v817
  %v819 = vand.u32 %v198, 4294901760
  %820 = vmatmul.mubr.f32.gmra.mxu0 %v819
  %v821 = vpop.f32.mrf.mxu0
  %v822 = vadd.f32 %v421, %v821
  %v823 = vpop.f32.mrf.mxu0
  %v824 = vadd.f32 %v423, %v823
  %825 = vdwg.mxu0
  %v826 = vand.u32 %v231, 4294901760
  %v827 = vsub.f32 %v231, %v826
  %828 = vmatprep.subr.mxu0 %v827
  %v829 = vand.u32 %v230, 4294901760
  %v830 = vsub.f32 %v230, %v829
  %831 = vmatpush1.msra.mxu0 %v830
  %v832 = vand.u32 %v229, 4294901760
  %v833 = vsub.f32 %v229, %v832
  %834 = vmatprep.subr.mxu0 %v833
  %v835 = vand.u32 %v228, 4294901760
  %v836 = vsub.f32 %v228, %v835
  %837 = vmatpush1.msra.mxu0 %v836
  %v838 = vand.u32 %v227, 4294901760
  %v839 = vsub.f32 %v227, %v838
  %840 = vmatprep.subr.mxu0 %v839
  %v841 = vand.u32 %v226, 4294901760
  %v842 = vsub.f32 %v226, %v841
  %843 = vmatpush1.msra.mxu0 %v842
  %v844 = vand.u32 %v225, 4294901760
  %v845 = vsub.f32 %v225, %v844
  %846 = vmatprep.subr.mxu0 %v845
  %v847 = vand.u32 %v224, 4294901760
  %v848 = vsub.f32 %v224, %v847
  %849 = vmatpush1.msra.mxu0 %v848
  %v850 = vand.u32 %v223, 4294901760
  %v851 = vsub.f32 %v223, %v850
  %852 = vmatprep.subr.mxu0 %v851
  %v853 = vand.u32 %v222, 4294901760
  %v854 = vsub.f32 %v222, %v853
  %855 = vmatpush1.msra.mxu0 %v854
  %v856 = vand.u32 %v221, 4294901760
  %v857 = vsub.f32 %v221, %v856
  %858 = vmatprep.subr.mxu0 %v857
  %v859 = vand.u32 %v220, 4294901760
  %v860 = vsub.f32 %v220, %v859
  %861 = vmatpush1.msra.mxu0 %v860
  %v862 = vand.u32 %v219, 4294901760
  %v863 = vsub.f32 %v219, %v862
  %864 = vmatprep.subr.mxu0 %v863
  %v865 = vand.u32 %v218, 4294901760
  %v866 = vsub.f32 %v218, %v865
  %867 = vmatpush1.msra.mxu0 %v866
  %v868 = vand.u32 %v217, 4294901760
  %v869 = vsub.f32 %v217, %v868
  %870 = vmatprep.subr.mxu0 %v869
  %v871 = vand.u32 %v216, 4294901760
  %v872 = vsub.f32 %v216, %v871
  %873 = vmatpush1.msra.mxu0 %v872
  %v874 = vand.u32 %v215, 4294901760
  %v875 = vsub.f32 %v215, %v874
  %876 = vmatprep.subr.mxu0 %v875
  %v877 = vand.u32 %v214, 4294901760
  %v878 = vsub.f32 %v214, %v877
  %879 = vmatpush1.msra.mxu0 %v878
  %v880 = vand.u32 %v213, 4294901760
  %v881 = vsub.f32 %v213, %v880
  %882 = vmatprep.subr.mxu0 %v881
  %v883 = vand.u32 %v212, 4294901760
  %v884 = vsub.f32 %v212, %v883
  %885 = vmatpush1.msra.mxu0 %v884
  %v886 = vand.u32 %v211, 4294901760
  %v887 = vsub.f32 %v211, %v886
  %888 = vmatprep.subr.mxu0 %v887
  %v889 = vand.u32 %v210, 4294901760
  %v890 = vsub.f32 %v210, %v889
  %891 = vmatpush1.msra.mxu0 %v890
  %v892 = vand.u32 %v209, 4294901760
  %v893 = vsub.f32 %v209, %v892
  %894 = vmatprep.subr.mxu0 %v893
  %v895 = vand.u32 %v208, 4294901760
  %v896 = vsub.f32 %v208, %v895
  %897 = vmatpush1.msra.mxu0 %v896
  %v898 = vand.u32 %v207, 4294901760
  %v899 = vsub.f32 %v207, %v898
  %900 = vmatprep.subr.mxu0 %v899
  %v901 = vand.u32 %v206, 4294901760
  %v902 = vsub.f32 %v206, %v901
  %903 = vmatpush1.msra.mxu0 %v902
  %v904 = vand.u32 %v205, 4294901760
  %v905 = vsub.f32 %v205, %v904
  %906 = vmatprep.subr.mxu0 %v905
  %v907 = vand.u32 %v204, 4294901760
  %v908 = vsub.f32 %v204, %v907
  %909 = vmatpush1.msra.mxu0 %v908
  %v910 = vand.u32 %v203, 4294901760
  %v911 = vsub.f32 %v203, %v910
  %912 = vmatprep.subr.mxu0 %v911
  %v913 = vand.u32 %v202, 4294901760
  %v914 = vsub.f32 %v202, %v913
  %915 = vmatpush1.msra.mxu0 %v914
  %v916 = vand.u32 %v201, 4294901760
  %v917 = vsub.f32 %v201, %v916
  %918 = vmatprep.subr.mxu0 %v917
  %v919 = vand.u32 %v200, 4294901760
  %v920 = vsub.f32 %v200, %v919
  %921 = vmatpush1.msra.mxu0 %v920
  %v922 = vand.u32 %v263, 4294901760
  %v923 = vsub.f32 %v263, %v922
  %924 = vmatprep.subr.mxu0 %v923
  %v925 = vand.u32 %v262, 4294901760
  %v926 = vsub.f32 %v262, %v925
  %927 = vmatpush2.msra.mxu0 %v926
  %v928 = vand.u32 %v261, 4294901760
  %v929 = vsub.f32 %v261, %v928
  %930 = vmatprep.subr.mxu0 %v929
  %v931 = vand.u32 %v260, 4294901760
  %v932 = vsub.f32 %v260, %v931
  %933 = vmatpush2.msra.mxu0 %v932
  %v934 = vand.u32 %v259, 4294901760
  %v935 = vsub.f32 %v259, %v934
  %936 = vmatprep.subr.mxu0 %v935
  %v937 = vand.u32 %v258, 4294901760
  %v938 = vsub.f32 %v258, %v937
  %939 = vmatpush2.msra.mxu0 %v938
  %v940 = vand.u32 %v257, 4294901760
  %v941 = vsub.f32 %v257, %v940
  %942 = vmatprep.subr.mxu0 %v941
  %v943 = vand.u32 %v256, 4294901760
  %v944 = vsub.f32 %v256, %v943
  %945 = vmatpush2.msra.mxu0 %v944
  %v946 = vand.u32 %v255, 4294901760
  %v947 = vsub.f32 %v255, %v946
  %948 = vmatprep.subr.mxu0 %v947
  %v949 = vand.u32 %v254, 4294901760
  %v950 = vsub.f32 %v254, %v949
  %951 = vmatpush2.msra.mxu0 %v950
  %v952 = vand.u32 %v253, 4294901760
  %v953 = vsub.f32 %v253, %v952
  %954 = vmatprep.subr.mxu0 %v953
  %v955 = vand.u32 %v252, 4294901760
  %v956 = vsub.f32 %v252, %v955
  %957 = vmatpush2.msra.mxu0 %v956
  %v958 = vand.u32 %v251, 4294901760
  %v959 = vsub.f32 %v251, %v958
  %960 = vmatprep.subr.mxu0 %v959
  %v961 = vand.u32 %v250, 4294901760
  %v962 = vsub.f32 %v250, %v961
  %963 = vmatpush2.msra.mxu0 %v962
  %v964 = vand.u32 %v249, 4294901760
  %v965 = vsub.f32 %v249, %v964
  %966 = vmatprep.subr.mxu0 %v965
  %v967 = vand.u32 %v248, 4294901760
  %v968 = vsub.f32 %v248, %v967
  %969 = vmatpush2.msra.mxu0 %v968
  %v970 = vand.u32 %v247, 4294901760
  %v971 = vsub.f32 %v247, %v970
  %972 = vmatprep.subr.mxu0 %v971
  %v973 = vand.u32 %v246, 4294901760
  %v974 = vsub.f32 %v246, %v973
  %975 = vmatpush2.msra.mxu0 %v974
  %v976 = vand.u32 %v245, 4294901760
  %v977 = vsub.f32 %v245, %v976
  %978 = vmatprep.subr.mxu0 %v977
  %v979 = vand.u32 %v244, 4294901760
  %v980 = vsub.f32 %v244, %v979
  %981 = vmatpush2.msra.mxu0 %v980
  %v982 = vand.u32 %v243, 4294901760
  %v983 = vsub.f32 %v243, %v982
  %984 = vmatprep.subr.mxu0 %v983
  %v985 = vand.u32 %v242, 4294901760
  %v986 = vsub.f32 %v242, %v985
  %987 = vmatpush2.msra.mxu0 %v986
  %v988 = vand.u32 %v241, 4294901760
  %v989 = vsub.f32 %v241, %v988
  %990 = vmatprep.subr.mxu0 %v989
  %v991 = vand.u32 %v240, 4294901760
  %v992 = vsub.f32 %v240, %v991
  %993 = vmatpush2.msra.mxu0 %v992
  %v994 = vand.u32 %v239, 4294901760
  %v995 = vsub.f32 %v239, %v994
  %996 = vmatprep.subr.mxu0 %v995
  %v997 = vand.u32 %v238, 4294901760
  %v998 = vsub.f32 %v238, %v997
  %999 = vmatpush2.msra.mxu0 %v998
  %v1000 = vand.u32 %v237, 4294901760
  %v1001 = vsub.f32 %v237, %v1000
  %1002 = vmatprep.subr.mxu0 %v1001
  %v1003 = vand.u32 %v236, 4294901760
  %v1004 = vsub.f32 %v236, %v1003
  %1005 = vmatpush2.msra.mxu0 %v1004
  %v1006 = vand.u32 %v235, 4294901760
  %v1007 = vsub.f32 %v235, %v1006
  %1008 = vmatprep.subr.mxu0 %v1007
  %v1009 = vand.u32 %v234, 4294901760
  %v1010 = vsub.f32 %v234, %v1009
  %1011 = vmatpush2.msra.mxu0 %v1010
  %v1012 = vand.u32 %v233, 4294901760
  %v1013 = vsub.f32 %v233, %v1012
  %1014 = vmatprep.subr.mxu0 %v1013
  %v1015 = vand.u32 %v232, 4294901760
  %v1016 = vsub.f32 %v232, %v1015
  %1017 = vmatpush2.msra.mxu0 %v1016
  %v1018 = vand.u32 %v197, 4294901760
  %v1019 = vsub.f32 %v197, %v1018
  %1020 = vmatprep.mubr.f32.mxu0 %v1019
  %v1021 = vand.u32 %v196, 4294901760
  %v1022 = vsub.f32 %v196, %v1021
  %1023 = vmatmul.mubr.f32.gmra.mxu0 %v1022
  %v1024 = vpop.f32.mrf.mxu0
  %v1025 = vadd.f32 %v814, %v1024
  %v1026 = vpop.f32.mrf.mxu0
  %v1027 = vadd.f32 %v816, %v1026
  %v1028 = vand.u32 %v199, 4294901760
  %v1029 = vsub.f32 %v199, %v1028
  %1030 = vmatprep.mubr.f32.mxu0 %v1029
  %v1031 = vand.u32 %v198, 4294901760
  %v1032 = vsub.f32 %v198, %v1031
  %1033 = vmatmul.mubr.f32.gmra.mxu0 %v1032
  %v1034 = vpop.f32.mrf.mxu0
  %v1035 = vadd.f32 %v822, %v1034
  %v1036 = vpop.f32.mrf.mxu0
  %v1037 = vadd.f32 %v824, %v1036
  %1038 = vdwg.mxu0
  %v1039 = vand.u32 %v231, 4294901760
  %1040 = vmatprep.subr.mxu0 %v1039
  %v1041 = vand.u32 %v230, 4294901760
  %1042 = vmatpush1.msra.mxu0 %v1041
  %v1043 = vand.u32 %v229, 4294901760
  %1044 = vmatprep.subr.mxu0 %v1043
  %v1045 = vand.u32 %v228, 4294901760
  %1046 = vmatpush1.msra.mxu0 %v1045
  %v1047 = vand.u32 %v227, 4294901760
  %1048 = vmatprep.subr.mxu0 %v1047
  %v1049 = vand.u32 %v226, 4294901760
  %1050 = vmatpush1.msra.mxu0 %v1049
  %v1051 = vand.u32 %v225, 4294901760
  %1052 = vmatprep.subr.mxu0 %v1051
  %v1053 = vand.u32 %v224, 4294901760
  %1054 = vmatpush1.msra.mxu0 %v1053
  %v1055 = vand.u32 %v223, 4294901760
  %1056 = vmatprep.subr.mxu0 %v1055
  %v1057 = vand.u32 %v222, 4294901760
  %1058 = vmatpush1.msra.mxu0 %v1057
  %v1059 = vand.u32 %v221, 4294901760
  %1060 = vmatprep.subr.mxu0 %v1059
  %v1061 = vand.u32 %v220, 4294901760
  %1062 = vmatpush1.msra.mxu0 %v1061
  %v1063 = vand.u32 %v219, 4294901760
  %1064 = vmatprep.subr.mxu0 %v1063
  %v1065 = vand.u32 %v218, 4294901760
  %1066 = vmatpush1.msra.mxu0 %v1065
  %v1067 = vand.u32 %v217, 4294901760
  %1068 = vmatprep.subr.mxu0 %v1067
  %v1069 = vand.u32 %v216, 4294901760
  %1070 = vmatpush1.msra.mxu0 %v1069
  %v1071 = vand.u32 %v215, 4294901760
  %1072 = vmatprep.subr.mxu0 %v1071
  %v1073 = vand.u32 %v214, 4294901760
  %1074 = vmatpush1.msra.mxu0 %v1073
  %v1075 = vand.u32 %v213, 4294901760
  %1076 = vmatprep.subr.mxu0 %v1075
  %v1077 = vand.u32 %v212, 4294901760
  %1078 = vmatpush1.msra.mxu0 %v1077
  %v1079 = vand.u32 %v211, 4294901760
  %1080 = vmatprep.subr.mxu0 %v1079
  %v1081 = vand.u32 %v210, 4294901760
  %1082 = vmatpush1.msra.mxu0 %v1081
  %v1083 = vand.u32 %v209, 4294901760
  %1084 = vmatprep.subr.mxu0 %v1083
  %v1085 = vand.u32 %v208, 4294901760
  %1086 = vmatpush1.msra.mxu0 %v1085
  %v1087 = vand.u32 %v207, 4294901760
  %1088 = vmatprep.subr.mxu0 %v1087
  %v1089 = vand.u32 %v206, 4294901760
  %1090 = vmatpush1.msra.mxu0 %v1089
  %v1091 = vand.u32 %v205, 4294901760
  %1092 = vmatprep.subr.mxu0 %v1091
  %v1093 = vand.u32 %v204, 4294901760
  %1094 = vmatpush1.msra.mxu0 %v1093
  %v1095 = vand.u32 %v203, 4294901760
  %1096 = vmatprep.subr.mxu0 %v1095
  %v1097 = vand.u32 %v202, 4294901760
  %1098 = vmatpush1.msra.mxu0 %v1097
  %v1099 = vand.u32 %v201, 4294901760
  %1100 = vmatprep.subr.mxu0 %v1099
  %v1101 = vand.u32 %v200, 4294901760
  %1102 = vmatpush1.msra.mxu0 %v1101
  %v1103 = vand.u32 %v263, 4294901760
  %1104 = vmatprep.subr.mxu0 %v1103
  %v1105 = vand.u32 %v262, 4294901760
  %1106 = vmatpush2.msra.mxu0 %v1105
  %v1107 = vand.u32 %v261, 4294901760
  %1108 = vmatprep.subr.mxu0 %v1107
  %v1109 = vand.u32 %v260, 4294901760
  %1110 = vmatpush2.msra.mxu0 %v1109
  %v1111 = vand.u32 %v259, 4294901760
  %1112 = vmatprep.subr.mxu0 %v1111
  %v1113 = vand.u32 %v258, 4294901760
  %1114 = vmatpush2.msra.mxu0 %v1113
  %v1115 = vand.u32 %v257, 4294901760
  %1116 = vmatprep.subr.mxu0 %v1115
  %v1117 = vand.u32 %v256, 4294901760
  %1118 = vmatpush2.msra.mxu0 %v1117
  %v1119 = vand.u32 %v255, 4294901760
  %1120 = vmatprep.subr.mxu0 %v1119
  %v1121 = vand.u32 %v254, 4294901760
  %1122 = vmatpush2.msra.mxu0 %v1121
  %v1123 = vand.u32 %v253, 4294901760
  %1124 = vmatprep.subr.mxu0 %v1123
  %v1125 = vand.u32 %v252, 4294901760
  %1126 = vmatpush2.msra.mxu0 %v1125
  %v1127 = vand.u32 %v251, 4294901760
  %1128 = vmatprep.subr.mxu0 %v1127
  %v1129 = vand.u32 %v250, 4294901760
  %1130 = vmatpush2.msra.mxu0 %v1129
  %v1131 = vand.u32 %v249, 4294901760
  %1132 = vmatprep.subr.mxu0 %v1131
  %v1133 = vand.u32 %v248, 4294901760
  %1134 = vmatpush2.msra.mxu0 %v1133
  %v1135 = vand.u32 %v247, 4294901760
  %1136 = vmatprep.subr.mxu0 %v1135
  %v1137 = vand.u32 %v246, 4294901760
  %1138 = vmatpush2.msra.mxu0 %v1137
  %v1139 = vand.u32 %v245, 4294901760
  %1140 = vmatprep.subr.mxu0 %v1139
  %v1141 = vand.u32 %v244, 4294901760
  %1142 = vmatpush2.msra.mxu0 %v1141
  %v1143 = vand.u32 %v243, 4294901760
  %1144 = vmatprep.subr.mxu0 %v1143
  %v1145 = vand.u32 %v242, 4294901760
  %1146 = vmatpush2.msra.mxu0 %v1145
  %v1147 = vand.u32 %v241, 4294901760
  %1148 = vmatprep.subr.mxu0 %v1147
  %v1149 = vand.u32 %v240, 4294901760
  %1150 = vmatpush2.msra.mxu0 %v1149
  %v1151 = vand.u32 %v239, 4294901760
  %1152 = vmatprep.subr.mxu0 %v1151
  %v1153 = vand.u32 %v238, 4294901760
  %1154 = vmatpush2.msra.mxu0 %v1153
  %v1155 = vand.u32 %v237, 4294901760
  %1156 = vmatprep.subr.mxu0 %v1155
  %v1157 = vand.u32 %v236, 4294901760
  %1158 = vmatpush2.msra.mxu0 %v1157
  %v1159 = vand.u32 %v235, 4294901760
  %1160 = vmatprep.subr.mxu0 %v1159
  %v1161 = vand.u32 %v234, 4294901760
  %1162 = vmatpush2.msra.mxu0 %v1161
  %v1163 = vand.u32 %v233, 4294901760
  %1164 = vmatprep.subr.mxu0 %v1163
  %v1165 = vand.u32 %v232, 4294901760
  %1166 = vmatpush2.msra.mxu0 %v1165
  %v1167 = vand.u32 %v197, 4294901760
  %v1168 = vsub.f32 %v197, %v1167
  %v1169 = vand.u32 %v1168, 4294901760
  %1170 = vmatprep.mubr.f32.mxu0 %v1169
  %v1171 = vand.u32 %v196, 4294901760
  %v1172 = vsub.f32 %v196, %v1171
  %v1173 = vand.u32 %v1172, 4294901760
  %1174 = vmatmul.mubr.f32.gmra.mxu0 %v1173
  %v1175 = vpop.f32.mrf.mxu0
  %v1176 = vadd.f32 %v1025, %v1175
  %v1177 = vpop.f32.mrf.mxu0
  %v1178 = vadd.f32 %v1027, %v1177
  %v1179 = vand.u32 %v199, 4294901760
  %v1180 = vsub.f32 %v199, %v1179
  %v1181 = vand.u32 %v1180, 4294901760
  %1182 = vmatprep.mubr.f32.mxu0 %v1181
  %v1183 = vand.u32 %v198, 4294901760
  %v1184 = vsub.f32 %v198, %v1183
  %v1185 = vand.u32 %v1184, 4294901760
  %1186 = vmatmul.mubr.f32.gmra.mxu0 %v1185
  %v1187 = vpop.f32.mrf.mxu0
  %v1188 = vadd.f32 %v1035, %v1187
  %v1189 = vpop.f32.mrf.mxu0
  %v1190 = vadd.f32 %v1037, %v1189
  %1191 = vdwg.mxu0
  %v1192 = vand.u32 %v231, 4294901760
  %v1193 = vsub.f32 %v231, %v1192
  %v1194 = vand.u32 %v1193, 4294901760
  %1195 = vmatprep.subr.mxu0 %v1194
  %v1196 = vand.u32 %v230, 4294901760
  %v1197 = vsub.f32 %v230, %v1196
  %v1198 = vand.u32 %v1197, 4294901760
  %1199 = vmatpush1.msra.mxu0 %v1198
  %v1200 = vand.u32 %v229, 4294901760
  %v1201 = vsub.f32 %v229, %v1200
  %v1202 = vand.u32 %v1201, 4294901760
  %1203 = vmatprep.subr.mxu0 %v1202
  %v1204 = vand.u32 %v228, 4294901760
  %v1205 = vsub.f32 %v228, %v1204
  %v1206 = vand.u32 %v1205, 4294901760
  %1207 = vmatpush1.msra.mxu0 %v1206
  %v1208 = vand.u32 %v227, 4294901760
  %v1209 = vsub.f32 %v227, %v1208
  %v1210 = vand.u32 %v1209, 4294901760
  %1211 = vmatprep.subr.mxu0 %v1210
  %v1212 = vand.u32 %v226, 4294901760
  %v1213 = vsub.f32 %v226, %v1212
  %v1214 = vand.u32 %v1213, 4294901760
  %1215 = vmatpush1.msra.mxu0 %v1214
  %v1216 = vand.u32 %v225, 4294901760
  %v1217 = vsub.f32 %v225, %v1216
  %v1218 = vand.u32 %v1217, 4294901760
  %1219 = vmatprep.subr.mxu0 %v1218
  %v1220 = vand.u32 %v224, 4294901760
  %v1221 = vsub.f32 %v224, %v1220
  %v1222 = vand.u32 %v1221, 4294901760
  %1223 = vmatpush1.msra.mxu0 %v1222
  %v1224 = vand.u32 %v223, 4294901760
  %v1225 = vsub.f32 %v223, %v1224
  %v1226 = vand.u32 %v1225, 4294901760
  %1227 = vmatprep.subr.mxu0 %v1226
  %v1228 = vand.u32 %v222, 4294901760
  %v1229 = vsub.f32 %v222, %v1228
  %v1230 = vand.u32 %v1229, 4294901760
  %1231 = vmatpush1.msra.mxu0 %v1230
  %v1232 = vand.u32 %v221, 4294901760
  %v1233 = vsub.f32 %v221, %v1232
  %v1234 = vand.u32 %v1233, 4294901760
  %1235 = vmatprep.subr.mxu0 %v1234
  %v1236 = vand.u32 %v220, 4294901760
  %v1237 = vsub.f32 %v220, %v1236
  %v1238 = vand.u32 %v1237, 4294901760
  %1239 = vmatpush1.msra.mxu0 %v1238
  %v1240 = vand.u32 %v219, 4294901760
  %v1241 = vsub.f32 %v219, %v1240
  %v1242 = vand.u32 %v1241, 4294901760
  %1243 = vmatprep.subr.mxu0 %v1242
  %v1244 = vand.u32 %v218, 4294901760
  %v1245 = vsub.f32 %v218, %v1244
  %v1246 = vand.u32 %v1245, 4294901760
  %1247 = vmatpush1.msra.mxu0 %v1246
  %v1248 = vand.u32 %v217, 4294901760
  %v1249 = vsub.f32 %v217, %v1248
  %v1250 = vand.u32 %v1249, 4294901760
  %1251 = vmatprep.subr.mxu0 %v1250
  %v1252 = vand.u32 %v216, 4294901760
  %v1253 = vsub.f32 %v216, %v1252
  %v1254 = vand.u32 %v1253, 4294901760
  %1255 = vmatpush1.msra.mxu0 %v1254
  %v1256 = vand.u32 %v215, 4294901760
  %v1257 = vsub.f32 %v215, %v1256
  %v1258 = vand.u32 %v1257, 4294901760
  %1259 = vmatprep.subr.mxu0 %v1258
  %v1260 = vand.u32 %v214, 4294901760
  %v1261 = vsub.f32 %v214, %v1260
  %v1262 = vand.u32 %v1261, 4294901760
  %1263 = vmatpush1.msra.mxu0 %v1262
  %v1264 = vand.u32 %v213, 4294901760
  %v1265 = vsub.f32 %v213, %v1264
  %v1266 = vand.u32 %v1265, 4294901760
  %1267 = vmatprep.subr.mxu0 %v1266
  %v1268 = vand.u32 %v212, 4294901760
  %v1269 = vsub.f32 %v212, %v1268
  %v1270 = vand.u32 %v1269, 4294901760
  %1271 = vmatpush1.msra.mxu0 %v1270
  %v1272 = vand.u32 %v211, 4294901760
  %v1273 = vsub.f32 %v211, %v1272
  %v1274 = vand.u32 %v1273, 4294901760
  %1275 = vmatprep.subr.mxu0 %v1274
  %v1276 = vand.u32 %v210, 4294901760
  %v1277 = vsub.f32 %v210, %v1276
  %v1278 = vand.u32 %v1277, 4294901760
  %1279 = vmatpush1.msra.mxu0 %v1278
  %v1280 = vand.u32 %v209, 4294901760
  %v1281 = vsub.f32 %v209, %v1280
  %v1282 = vand.u32 %v1281, 4294901760
  %1283 = vmatprep.subr.mxu0 %v1282
  %v1284 = vand.u32 %v208, 4294901760
  %v1285 = vsub.f32 %v208, %v1284
  %v1286 = vand.u32 %v1285, 4294901760
  %1287 = vmatpush1.msra.mxu0 %v1286
  %v1288 = vand.u32 %v207, 4294901760
  %v1289 = vsub.f32 %v207, %v1288
  %v1290 = vand.u32 %v1289, 4294901760
  %1291 = vmatprep.subr.mxu0 %v1290
  %v1292 = vand.u32 %v206, 4294901760
  %v1293 = vsub.f32 %v206, %v1292
  %v1294 = vand.u32 %v1293, 4294901760
  %1295 = vmatpush1.msra.mxu0 %v1294
  %v1296 = vand.u32 %v205, 4294901760
  %v1297 = vsub.f32 %v205, %v1296
  %v1298 = vand.u32 %v1297, 4294901760
  %1299 = vmatprep.subr.mxu0 %v1298
  %v1300 = vand.u32 %v204, 4294901760
  %v1301 = vsub.f32 %v204, %v1300
  %v1302 = vand.u32 %v1301, 4294901760
  %1303 = vmatpush1.msra.mxu0 %v1302
  %v1304 = vand.u32 %v203, 4294901760
  %v1305 = vsub.f32 %v203, %v1304
  %v1306 = vand.u32 %v1305, 4294901760
  %1307 = vmatprep.subr.mxu0 %v1306
  %v1308 = vand.u32 %v202, 4294901760
  %v1309 = vsub.f32 %v202, %v1308
  %v1310 = vand.u32 %v1309, 4294901760
  %1311 = vmatpush1.msra.mxu0 %v1310
  %v1312 = vand.u32 %v201, 4294901760
  %v1313 = vsub.f32 %v201, %v1312
  %v1314 = vand.u32 %v1313, 4294901760
  %1315 = vmatprep.subr.mxu0 %v1314
  %v1316 = vand.u32 %v200, 4294901760
  %v1317 = vsub.f32 %v200, %v1316
  %v1318 = vand.u32 %v1317, 4294901760
  %1319 = vmatpush1.msra.mxu0 %v1318
  %v1320 = vand.u32 %v263, 4294901760
  %v1321 = vsub.f32 %v263, %v1320
  %v1322 = vand.u32 %v1321, 4294901760
  %1323 = vmatprep.subr.mxu0 %v1322
  %v1324 = vand.u32 %v262, 4294901760
  %v1325 = vsub.f32 %v262, %v1324
  %v1326 = vand.u32 %v1325, 4294901760
  %1327 = vmatpush2.msra.mxu0 %v1326
  %v1328 = vand.u32 %v261, 4294901760
  %v1329 = vsub.f32 %v261, %v1328
  %v1330 = vand.u32 %v1329, 4294901760
  %1331 = vmatprep.subr.mxu0 %v1330
  %v1332 = vand.u32 %v260, 4294901760
  %v1333 = vsub.f32 %v260, %v1332
  %v1334 = vand.u32 %v1333, 4294901760
  %1335 = vmatpush2.msra.mxu0 %v1334
  %v1336 = vand.u32 %v259, 4294901760
  %v1337 = vsub.f32 %v259, %v1336
  %v1338 = vand.u32 %v1337, 4294901760
  %1339 = vmatprep.subr.mxu0 %v1338
  %v1340 = vand.u32 %v258, 4294901760
  %v1341 = vsub.f32 %v258, %v1340
  %v1342 = vand.u32 %v1341, 4294901760
  %1343 = vmatpush2.msra.mxu0 %v1342
  %v1344 = vand.u32 %v257, 4294901760
  %v1345 = vsub.f32 %v257, %v1344
  %v1346 = vand.u32 %v1345, 4294901760
  %1347 = vmatprep.subr.mxu0 %v1346
  %v1348 = vand.u32 %v256, 4294901760
  %v1349 = vsub.f32 %v256, %v1348
  %v1350 = vand.u32 %v1349, 4294901760
  %1351 = vmatpush2.msra.mxu0 %v1350
  %v1352 = vand.u32 %v255, 4294901760
  %v1353 = vsub.f32 %v255, %v1352
  %v1354 = vand.u32 %v1353, 4294901760
  %1355 = vmatprep.subr.mxu0 %v1354
  %v1356 = vand.u32 %v254, 4294901760
  %v1357 = vsub.f32 %v254, %v1356
  %v1358 = vand.u32 %v1357, 4294901760
  %1359 = vmatpush2.msra.mxu0 %v1358
  %v1360 = vand.u32 %v253, 4294901760
  %v1361 = vsub.f32 %v253, %v1360
  %v1362 = vand.u32 %v1361, 4294901760
  %1363 = vmatprep.subr.mxu0 %v1362
  %v1364 = vand.u32 %v252, 4294901760
  %v1365 = vsub.f32 %v252, %v1364
  %v1366 = vand.u32 %v1365, 4294901760
  %1367 = vmatpush2.msra.mxu0 %v1366
  %v1368 = vand.u32 %v251, 4294901760
  %v1369 = vsub.f32 %v251, %v1368
  %v1370 = vand.u32 %v1369, 4294901760
  %1371 = vmatprep.subr.mxu0 %v1370
  %v1372 = vand.u32 %v250, 4294901760
  %v1373 = vsub.f32 %v250, %v1372
  %v1374 = vand.u32 %v1373, 4294901760
  %1375 = vmatpush2.msra.mxu0 %v1374
  %v1376 = vand.u32 %v249, 4294901760
  %v1377 = vsub.f32 %v249, %v1376
  %v1378 = vand.u32 %v1377, 4294901760
  %1379 = vmatprep.subr.mxu0 %v1378
  %v1380 = vand.u32 %v248, 4294901760
  %v1381 = vsub.f32 %v248, %v1380
  %v1382 = vand.u32 %v1381, 4294901760
  %1383 = vmatpush2.msra.mxu0 %v1382
  %v1384 = vand.u32 %v247, 4294901760
  %v1385 = vsub.f32 %v247, %v1384
  %v1386 = vand.u32 %v1385, 4294901760
  %1387 = vmatprep.subr.mxu0 %v1386
  %v1388 = vand.u32 %v246, 4294901760
  %v1389 = vsub.f32 %v246, %v1388
  %v1390 = vand.u32 %v1389, 4294901760
  %1391 = vmatpush2.msra.mxu0 %v1390
  %v1392 = vand.u32 %v245, 4294901760
  %v1393 = vsub.f32 %v245, %v1392
  %v1394 = vand.u32 %v1393, 4294901760
  %1395 = vmatprep.subr.mxu0 %v1394
  %v1396 = vand.u32 %v244, 4294901760
  %v1397 = vsub.f32 %v244, %v1396
  %v1398 = vand.u32 %v1397, 4294901760
  %1399 = vmatpush2.msra.mxu0 %v1398
  %v1400 = vand.u32 %v243, 4294901760
  %v1401 = vsub.f32 %v243, %v1400
  %v1402 = vand.u32 %v1401, 4294901760
  %1403 = vmatprep.subr.mxu0 %v1402
  %v1404 = vand.u32 %v242, 4294901760
  %v1405 = vsub.f32 %v242, %v1404
  %v1406 = vand.u32 %v1405, 4294901760
  %1407 = vmatpush2.msra.mxu0 %v1406
  %v1408 = vand.u32 %v241, 4294901760
  %v1409 = vsub.f32 %v241, %v1408
  %v1410 = vand.u32 %v1409, 4294901760
  %1411 = vmatprep.subr.mxu0 %v1410
  %v1412 = vand.u32 %v240, 4294901760
  %v1413 = vsub.f32 %v240, %v1412
  %v1414 = vand.u32 %v1413, 4294901760
  %1415 = vmatpush2.msra.mxu0 %v1414
  %v1416 = vand.u32 %v239, 4294901760
  %v1417 = vsub.f32 %v239, %v1416
  %v1418 = vand.u32 %v1417, 4294901760
  %1419 = vmatprep.subr.mxu0 %v1418
  %v1420 = vand.u32 %v238, 4294901760
  %v1421 = vsub.f32 %v238, %v1420
  %v1422 = vand.u32 %v1421, 4294901760
  %1423 = vmatpush2.msra.mxu0 %v1422
  %v1424 = vand.u32 %v237, 4294901760
  %v1425 = vsub.f32 %v237, %v1424
  %v1426 = vand.u32 %v1425, 4294901760
  %1427 = vmatprep.subr.mxu0 %v1426
  %v1428 = vand.u32 %v236, 4294901760
  %v1429 = vsub.f32 %v236, %v1428
  %v1430 = vand.u32 %v1429, 4294901760
  %1431 = vmatpush2.msra.mxu0 %v1430
  %v1432 = vand.u32 %v235, 4294901760
  %v1433 = vsub.f32 %v235, %v1432
  %v1434 = vand.u32 %v1433, 4294901760
  %1435 = vmatprep.subr.mxu0 %v1434
  %v1436 = vand.u32 %v234, 4294901760
  %v1437 = vsub.f32 %v234, %v1436
  %v1438 = vand.u32 %v1437, 4294901760
  %1439 = vmatpush2.msra.mxu0 %v1438
  %v1440 = vand.u32 %v233, 4294901760
  %v1441 = vsub.f32 %v233, %v1440
  %v1442 = vand.u32 %v1441, 4294901760
  %1443 = vmatprep.subr.mxu0 %v1442
  %v1444 = vand.u32 %v232, 4294901760
  %v1445 = vsub.f32 %v232, %v1444
  %v1446 = vand.u32 %v1445, 4294901760
  %1447 = vmatpush2.msra.mxu0 %v1446
  %v1448 = vand.u32 %v197, 4294901760
  %1449 = vmatprep.mubr.f32.mxu0 %v1448
  %v1450 = vand.u32 %v196, 4294901760
  %1451 = vmatmul.mubr.f32.gmra.mxu0 %v1450
  %v1452 = vpop.f32.mrf.mxu0
  %v1453 = vadd.f32 %v1176, %v1452
  %v1454 = vpop.f32.mrf.mxu0
  %v1455 = vadd.f32 %v1178, %v1454
  %v1456 = vand.u32 %v199, 4294901760
  %1457 = vmatprep.mubr.f32.mxu0 %v1456
  %v1458 = vand.u32 %v198, 4294901760
  %1459 = vmatmul.mubr.f32.gmra.mxu0 %v1458
  %v1460 = vpop.f32.mrf.mxu0
  %v1461 = vadd.f32 %v1188, %v1460
  %v1462 = vpop.f32.mrf.mxu0
  %v1463 = vadd.f32 %v1190, %v1462
  %1464 = vdwg.mxu0
  %v1465 = vand.u32 %v231, 4294901760
  %1466 = vmatprep.subr.mxu0 %v1465
  %v1467 = vand.u32 %v230, 4294901760
  %1468 = vmatpush1.msra.mxu0 %v1467
  %v1469 = vand.u32 %v229, 4294901760
  %1470 = vmatprep.subr.mxu0 %v1469
  %v1471 = vand.u32 %v228, 4294901760
  %1472 = vmatpush1.msra.mxu0 %v1471
  %v1473 = vand.u32 %v227, 4294901760
  %1474 = vmatprep.subr.mxu0 %v1473
  %v1475 = vand.u32 %v226, 4294901760
  %1476 = vmatpush1.msra.mxu0 %v1475
  %v1477 = vand.u32 %v225, 4294901760
  %1478 = vmatprep.subr.mxu0 %v1477
  %v1479 = vand.u32 %v224, 4294901760
  %1480 = vmatpush1.msra.mxu0 %v1479
  %v1481 = vand.u32 %v223, 4294901760
  %1482 = vmatprep.subr.mxu0 %v1481
  %v1483 = vand.u32 %v222, 4294901760
  %1484 = vmatpush1.msra.mxu0 %v1483
  %v1485 = vand.u32 %v221, 4294901760
  %1486 = vmatprep.subr.mxu0 %v1485
  %v1487 = vand.u32 %v220, 4294901760
  %1488 = vmatpush1.msra.mxu0 %v1487
  %v1489 = vand.u32 %v219, 4294901760
  %1490 = vmatprep.subr.mxu0 %v1489
  %v1491 = vand.u32 %v218, 4294901760
  %1492 = vmatpush1.msra.mxu0 %v1491
  %v1493 = vand.u32 %v217, 4294901760
  %1494 = vmatprep.subr.mxu0 %v1493
  %v1495 = vand.u32 %v216, 4294901760
  %1496 = vmatpush1.msra.mxu0 %v1495
  %v1497 = vand.u32 %v215, 4294901760
  %1498 = vmatprep.subr.mxu0 %v1497
  %v1499 = vand.u32 %v214, 4294901760
  %1500 = vmatpush1.msra.mxu0 %v1499
  %v1501 = vand.u32 %v213, 4294901760
  %1502 = vmatprep.subr.mxu0 %v1501
  %v1503 = vand.u32 %v212, 4294901760
  %1504 = vmatpush1.msra.mxu0 %v1503
  %v1505 = vand.u32 %v211, 4294901760
  %1506 = vmatprep.subr.mxu0 %v1505
  %v1507 = vand.u32 %v210, 4294901760
  %1508 = vmatpush1.msra.mxu0 %v1507
  %v1509 = vand.u32 %v209, 4294901760
  %1510 = vmatprep.subr.mxu0 %v1509
  %v1511 = vand.u32 %v208, 4294901760
  %1512 = vmatpush1.msra.mxu0 %v1511
  %v1513 = vand.u32 %v207, 4294901760
  %1514 = vmatprep.subr.mxu0 %v1513
  %v1515 = vand.u32 %v206, 4294901760
  %1516 = vmatpush1.msra.mxu0 %v1515
  %v1517 = vand.u32 %v205, 4294901760
  %1518 = vmatprep.subr.mxu0 %v1517
  %v1519 = vand.u32 %v204, 4294901760
  %1520 = vmatpush1.msra.mxu0 %v1519
  %v1521 = vand.u32 %v203, 4294901760
  %1522 = vmatprep.subr.mxu0 %v1521
  %v1523 = vand.u32 %v202, 4294901760
  %1524 = vmatpush1.msra.mxu0 %v1523
  %v1525 = vand.u32 %v201, 4294901760
  %1526 = vmatprep.subr.mxu0 %v1525
  %v1527 = vand.u32 %v200, 4294901760
  %1528 = vmatpush1.msra.mxu0 %v1527
  %v1529 = vand.u32 %v263, 4294901760
  %1530 = vmatprep.subr.mxu0 %v1529
  %v1531 = vand.u32 %v262, 4294901760
  %1532 = vmatpush2.msra.mxu0 %v1531
  %v1533 = vand.u32 %v261, 4294901760
  %1534 = vmatprep.subr.mxu0 %v1533
  %v1535 = vand.u32 %v260, 4294901760
  %1536 = vmatpush2.msra.mxu0 %v1535
  %v1537 = vand.u32 %v259, 4294901760
  %1538 = vmatprep.subr.mxu0 %v1537
  %v1539 = vand.u32 %v258, 4294901760
  %1540 = vmatpush2.msra.mxu0 %v1539
  %v1541 = vand.u32 %v257, 4294901760
  %1542 = vmatprep.subr.mxu0 %v1541
  %v1543 = vand.u32 %v256, 4294901760
  %1544 = vmatpush2.msra.mxu0 %v1543
  %v1545 = vand.u32 %v255, 4294901760
  %1546 = vmatprep.subr.mxu0 %v1545
  %v1547 = vand.u32 %v254, 4294901760
  %1548 = vmatpush2.msra.mxu0 %v1547
  %v1549 = vand.u32 %v253, 4294901760
  %1550 = vmatprep.subr.mxu0 %v1549
  %v1551 = vand.u32 %v252, 4294901760
  %1552 = vmatpush2.msra.mxu0 %v1551
  %v1553 = vand.u32 %v251, 4294901760
  %1554 = vmatprep.subr.mxu0 %v1553
  %v1555 = vand.u32 %v250, 4294901760
  %1556 = vmatpush2.msra.mxu0 %v1555
  %v1557 = vand.u32 %v249, 4294901760
  %1558 = vmatprep.subr.mxu0 %v1557
  %v1559 = vand.u32 %v248, 4294901760
  %1560 = vmatpush2.msra.mxu0 %v1559
  %v1561 = vand.u32 %v247, 4294901760
  %1562 = vmatprep.subr.mxu0 %v1561
  %v1563 = vand.u32 %v246, 4294901760
  %1564 = vmatpush2.msra.mxu0 %v1563
  %v1565 = vand.u32 %v245, 4294901760
  %1566 = vmatprep.subr.mxu0 %v1565
  %v1567 = vand.u32 %v244, 4294901760
  %1568 = vmatpush2.msra.mxu0 %v1567
  %v1569 = vand.u32 %v243, 4294901760
  %1570 = vmatprep.subr.mxu0 %v1569
  %v1571 = vand.u32 %v242, 4294901760
  %1572 = vmatpush2.msra.mxu0 %v1571
  %v1573 = vand.u32 %v241, 4294901760
  %1574 = vmatprep.subr.mxu0 %v1573
  %v1575 = vand.u32 %v240, 4294901760
  %1576 = vmatpush2.msra.mxu0 %v1575
  %v1577 = vand.u32 %v239, 4294901760
  %1578 = vmatprep.subr.mxu0 %v1577
  %v1579 = vand.u32 %v238, 4294901760
  %1580 = vmatpush2.msra.mxu0 %v1579
  %v1581 = vand.u32 %v237, 4294901760
  %1582 = vmatprep.subr.mxu0 %v1581
  %v1583 = vand.u32 %v236, 4294901760
  %1584 = vmatpush2.msra.mxu0 %v1583
  %v1585 = vand.u32 %v235, 4294901760
  %1586 = vmatprep.subr.mxu0 %v1585
  %v1587 = vand.u32 %v234, 4294901760
  %1588 = vmatpush2.msra.mxu0 %v1587
  %v1589 = vand.u32 %v233, 4294901760
  %1590 = vmatprep.subr.mxu0 %v1589
  %v1591 = vand.u32 %v232, 4294901760
  %1592 = vmatpush2.msra.mxu0 %v1591
  %v1593 = vand.u32 %v197, 4294901760
  %1594 = vmatprep.mubr.f32.mxu0 %v1593
  %v1595 = vand.u32 %v196, 4294901760
  %1596 = vmatmul.mubr.f32.gmra.mxu0 %v1595
  %v1597 = vpop.f32.mrf.mxu0
  %v1598 = vadd.f32 %v1453, %v1597
  %v1599 = vpop.f32.mrf.mxu0
  %v1600 = vadd.f32 %v1455, %v1599
  %v1601 = vand.u32 %v199, 4294901760
  %1602 = vmatprep.mubr.f32.mxu0 %v1601
  %v1603 = vand.u32 %v198, 4294901760
  %1604 = vmatmul.mubr.f32.gmra.mxu0 %v1603
  %v1605 = vpop.f32.mrf.mxu0
  %v1606 = vadd.f32 %v1461, %v1605
  %v1607 = vpop.f32.mrf.mxu0
  %v1608 = vadd.f32 %v1463, %v1607
  %1609 = vdwg.mxu0
  %1610 = vst [vmem:[%s4] sm:$0xff] %v1598
  %vm1611 = vcmask 441344
  %1612 = vst.msk [vmem:[%s4 + $0x8] sm:$0xff] %vm1611, %v1600
  %1613 = vst [vmem:[%s4 + $0x10] sm:$0xff] %v1606
  %1614 = vst.msk [vmem:[%s4 + $0x18] sm:$0xff] %vm1611, %v1608
  // Predicated region
  $region18: #{cnn_feature_extraction.1} parent=0 // pred_check
    _
  $region19: #{cnn_feature_extraction.1} parent=0 // pred_check_branch
    %1616 = sbr.rel (0) target = $region21
  $region20: #{cnn_feature_extraction.1} parent=0 // pred_region
    _
  $region21: #{cnn_feature_extraction.1} parent=0 // pred_fallthru
    _
  // Predicated region
  $region22: #{cnn_feature_extraction.1} parent=0 // pred_check
    _
  $region23: #{cnn_feature_extraction.1} parent=0 // pred_check_branch
    %1618 = sbr.rel (0) target = $region25
  $region24: #{cnn_feature_extraction.1} parent=0 // pred_region
    _
  $region25: #{cnn_feature_extraction.1} parent=0 // pred_fallthru
    _

</llo_original>
